<compile_context>
chip_gen: v7x
topology: tpu7x:2x2x1
jax: 0.10.0
libtpu: 0.0.40
codegen_flags: <defaults>
</compile_context>

<pallas_src>
import functools

import jax
import jax.numpy as jnp
from jax import lax
from jax.experimental import pallas as pl
from jax.experimental.pallas import tpu as pltpu


# --------------------------------------------------------------------------- #
# Single-pass kernels: whole (C, HW) image slab(s) resident per grid step.    #
# --------------------------------------------------------------------------- #

def _se_kernel_chw(x_ref, w1_ref, b1_ref, w2_ref, b2_ref, o_ref):
    """x_ref/o_ref: (TB, C, HW); w1: (C, Hd); b1: (1, Hd); w2: (Hd, C); b2: (1, C)."""
    tb, c, hw = x_ref.shape
    chunk = hw if hw <= 1024 else 1024                 # lane-aligned chunk starts
    n_full, rem = hw // chunk, hw % chunk

    # Phase 1: global average pool, f32 accumulation, one HW chunk at a time so
    # the f32 upcast never materializes a whole-slab temporary (bf16 inputs).
    acc = jnp.zeros((tb, c), jnp.float32)
    for j in range(n_full):
        xs = x_ref[:, :, pl.ds(j * chunk, chunk)]
        acc = acc + jnp.sum(xs, axis=-1, dtype=jnp.float32)
    if rem:
        xs = x_ref[:, :, pl.ds(n_full * chunk, rem)]
        acc = acc + jnp.sum(xs, axis=-1, dtype=jnp.float32)
    pooled = acc * jnp.float32(1.0 / hw)                              # (TB, C)

    # Squeeze-excite MLP (tiny; MXU) + sigmoid gate.
    h = jnp.dot(pooled, w1_ref[...], preferred_element_type=jnp.float32,
                precision=lax.Precision.HIGHEST) + b1_ref[...]
    h = jnp.maximum(h, 0.0)
    e = jnp.dot(h, w2_ref[...], preferred_element_type=jnp.float32,
                precision=lax.Precision.HIGHEST) + b2_ref[...]
    gate = jax.nn.sigmoid(e).astype(x_ref.dtype)[:, :, None]          # (TB, C, 1)

    # Phase 2: channel-wise rescale in the input dtype, chunk at a time.
    for j in range(n_full):
        sl = pl.ds(j * chunk, chunk)
        o_ref[:, :, sl] = (x_ref[:, :, sl] * gate).astype(o_ref.dtype)
    if rem:
        sl = pl.ds(n_full * chunk, rem)
        o_ref[:, :, sl] = (x_ref[:, :, sl] * gate).astype(o_ref.dtype)


def _se_kernel_hwc(x_ref, w1_ref, b1_ref, w2_ref, b2_ref, o_ref):
    """Channels-last: x_ref/o_ref: (TB, HW, C); C sits on the 128-lane axis."""
    tb, hw, c = x_ref.shape
    chunk = hw if hw <= 512 else 512                   # sublane-aligned chunk starts
    n_full, rem = hw // chunk, hw % chunk

    acc = jnp.zeros((tb, c), jnp.float32)
    for j in range(n_full):
        xs = x_ref[:, pl.ds(j * chunk, chunk), :]
        acc = acc + jnp.sum(xs, axis=1, dtype=jnp.float32)
    if rem:
        xs = x_ref[:, pl.ds(n_full * chunk, rem), :]
        acc = acc + jnp.sum(xs, axis=1, dtype=jnp.float32)
    pooled = acc * jnp.float32(1.0 / hw)

    h = jnp.dot(pooled, w1_ref[...], preferred_element_type=jnp.float32,
                precision=lax.Precision.HIGHEST) + b1_ref[...]
    h = jnp.maximum(h, 0.0)
    e = jnp.dot(h, w2_ref[...], preferred_element_type=jnp.float32,
                precision=lax.Precision.HIGHEST) + b2_ref[...]
    gate = jax.nn.sigmoid(e).astype(x_ref.dtype)[:, None, :]          # (TB, 1, C)

    for j in range(n_full):
        sl = pl.ds(j * chunk, chunk)
        o_ref[:, sl, :] = (x_ref[:, sl, :] * gate).astype(o_ref.dtype)
    if rem:
        sl = pl.ds(n_full * chunk, rem)
        o_ref[:, sl, :] = (x_ref[:, sl, :] * gate).astype(o_ref.dtype)


# --------------------------------------------------------------------------- #
# Two-pass fallback kernels (image too large for a single resident slab).     #
# --------------------------------------------------------------------------- #

def _pool_kernel_chw(x_ref, o_ref, *, hw_total):
    """Accumulate per-channel sums. x_ref: (1, C, HWB); o_ref: (1, C, 1) f32."""
    j = pl.program_id(1)

    @pl.when(j == 0)
    def _init():
        o_ref[...] = jnp.zeros_like(o_ref)

    x = x_ref[...]
    hw_blk = x.shape[-1]
    if hw_total % hw_blk:   # static: mask padding of the ragged last HW block
        pos = j * hw_blk + lax.broadcasted_iota(jnp.int32, x.shape, 2)
        x = jnp.where(pos < hw_total, x, jnp.zeros_like(x))
    o_ref[...] += jnp.sum(x, axis=-1, keepdims=True, dtype=jnp.float32)


def _pool_kernel_hwc(x_ref, o_ref, *, hw_total):
    """x_ref: (1, HWB, C); o_ref: (1, 1, C) f32."""
    j = pl.program_id(1)

    @pl.when(j == 0)
    def _init():
        o_ref[...] = jnp.zeros_like(o_ref)

    x = x_ref[...]
    hw_blk = x.shape[1]
    if hw_total % hw_blk:
        pos = j * hw_blk + lax.broadcasted_iota(jnp.int32, x.shape, 1)
        x = jnp.where(pos < hw_total, x, jnp.zeros_like(x))
    o_ref[...] += jnp.sum(x, axis=1, keepdims=True, dtype=jnp.float32)


def _scale_kernel(x_ref, g_ref, o_ref):
    """o = x * gate; gate already carries the right broadcast singleton dims."""
    gate = g_ref[...].astype(x_ref.dtype)
    o_ref[...] = (x_ref[...] * gate).astype(o_ref.dtype)


# --------------------------------------------------------------------------- #
# Wrappers                                                                    #
# --------------------------------------------------------------------------- #

def prepare_se_params(w1, b1, w2, b2):
    """PyTorch nn.Linear params (y = x @ W.T + b) -> kernel layout, once."""
    hidden, in_channels = w1.shape
    return (jnp.transpose(w1),            # (C, hidden)
            b1.reshape(1, hidden),        # (1, hidden)
            jnp.transpose(w2),            # (hidden, C)
            b2.reshape(1, in_channels))   # (1, C)


def _generation_vmem_budget():
    """Scoped-VMEM budget with headroom: ~96 MiB on 128-MiB parts, ~40 MiB on v7x."""
    try:
        cap = int(getattr(pltpu.get_tpu_info(), "vmem_capacity_bytes", 0) or 0)
    except Exception:
        cap = 0
    if cap <= 0:
        cap = 64 << 20                      # conservative default: v7x per-TC size
    if cap >= (96 << 20):
        return 96 << 20                     # v5e / v6e (128 MiB physical)
    return max(cap // 2, min(40 << 20, cap - (24 << 20)))


def _pick_batch_tile(batch, per_image_bytes, max_tile):
    """Batch tile (divisor of batch) giving >=4-ish, even step counts, 2-8 MiB slabs."""
    max_tile = max(1, min(int(max_tile), batch))
    divisors = [d for d in range(1, max_tile + 1) if batch % d == 0]

    def score(d):
        steps = batch // d
        slab = d * per_image_bytes
        return (min(steps, 4),                                    # pipelining (>=4 steps)
                1 if (steps % 2 == 0 or steps == batch) else 0,   # even steps (v7x megacore)
                1 if (2 << 20) <= slab <= (8 << 20) else 0,       # 2-8 MiB per-step slabs
                d)                                                # then: largest tile
    return max(divisors, key=score)


def squeeze_excitation(x, w1t, b1r, w2t, b2r, *, channels_last=False,
                       vmem_budget_bytes=None):
    """SqueezeExcitation forward. x: (B, C, H, W), or (B, H, W, C) if channels_last."""
    if channels_last:
        B, H, W, C = x.shape
    else:
        B, C, H, W = x.shape
    hidden = w1t.shape[1]
    HW = H * W
    itemsize = jnp.dtype(x.dtype).itemsize

    vmem_limit = _generation_vmem_budget()
    budget = int(vmem_budget_bytes) if vmem_budget_bytes else vmem_limit
    weights_bytes = sum(int(a.size) * jnp.dtype(a.dtype).itemsize
                        for a in (w1t, b1r, w2t, b2r))
    headroom = min(2 << 20, max(budget // 8, 1 << 18))
    avail = max(budget - 2 * weights_bytes - headroom, 1 << 18)

    per_image = C * HW * itemsize
    # Free reshape only -- the HBM layout is never changed.
    x_in = x.reshape(B, HW, C) if channels_last else x.reshape(B, C, HW)

    w_specs = [pl.BlockSpec((C, hidden), lambda b: (0, 0)),
               pl.BlockSpec((1, hidden), lambda b: (0, 0)),
               pl.BlockSpec((hidden, C), lambda b: (0, 0)),
               pl.BlockSpec((1, C), lambda b: (0, 0))]

    # ------------------------------------------------------------------ #
    # Fast path: double-buffered (in + out) batch slabs fit in VMEM.     #
    # ------------------------------------------------------------------ #
    if 4 * per_image <= avail:
        tb = _pick_batch_tile(B, per_image, avail // (4 * per_image))
        steps = B // tb
        if channels_last:
            kernel = _se_kernel_hwc
            xo_spec = pl.BlockSpec((tb, HW, C), lambda b: (b, 0, 0))
        else:
            kernel = _se_kernel_chw
            xo_spec = pl.BlockSpec((tb, C, HW), lambda b: (b, 0, 0))

        cost = pl.CostEstimate(
            flops=int(2 * B * C * HW + 4 * B * C * hidden),
            transcendentals=int(B * C),
            bytes_accessed=int(2 * B * C * HW * itemsize + weights_bytes),
        )
        out_flat = pl.pallas_call(
            kernel,
            out_shape=jax.ShapeDtypeStruct(x_in.shape, x.dtype),
            grid_spec=pltpu.PrefetchScalarGridSpec(
                num_scalar_prefetch=0,
                grid=(steps,),
                in_specs=[xo_spec] + w_specs,
                out_specs=xo_spec,
            ),
            compiler_params=pltpu.CompilerParams(
                dimension_semantics=("parallel",),
                vmem_limit_bytes=int(vmem_limit),
            ),
            cost_estimate=cost,
        )(x_in, w1t, b1r, w2t, b2r)
        return out_flat.reshape(x.shape)

    # ------------------------------------------------------------------ #
    # Fallback (very large C*HW, e.g. v7x 64 MiB/TC): pass 1 pools per-  #
    # channel sums over HW chunks ("arbitrary" reduction axis); the tiny #
    # gate MLP runs as plain XLA; pass 2 rescales the HW chunks.         #
    # ------------------------------------------------------------------ #
    lane_align = 8 if channels_last else 128
    blk = min(HW, avail // (4 * C * itemsize), (4 << 20) // max(C * itemsize, 1))
    blk = (int(blk) // lane_align) * lane_align
    if blk <= 0:
        blk = min(HW, lane_align)
    hw_steps = -(-HW // blk)

    if channels_last:
        x_spec = pl.BlockSpec((1, blk, C), lambda b, j: (b, j, 0))
        p_spec = pl.BlockSpec((1, 1, C), lambda b, j: (b, 0, 0))
        pool_kernel = functools.partial(_pool_kernel_hwc, hw_total=HW)
        pooled_shape = (B, 1, C)
    else:
        x_spec = pl.BlockSpec((1, C, blk), lambda b, j: (b, 0, j))
        p_spec = pl.BlockSpec((1, C, 1), lambda b, j: (b, 0, 0))
        pool_kernel = functools.partial(_pool_kernel_chw, hw_total=HW)
        pooled_shape = (B, C, 1)

    pooled = pl.pallas_call(
        pool_kernel,
        out_shape=jax.ShapeDtypeStruct(pooled_shape, jnp.float32),
        grid_spec=pltpu.PrefetchScalarGridSpec(
            num_scalar_prefetch=0,
            grid=(B, hw_steps),
            in_specs=[x_spec],
            out_specs=p_spec,
        ),
        compiler_params=pltpu.CompilerParams(
            dimension_semantics=("parallel", "arbitrary"),
            vmem_limit_bytes=int(vmem_limit),
        ),
        cost_estimate=pl.CostEstimate(
            flops=int(B * C * HW),
            transcendentals=0,
            bytes_accessed=int(B * C * HW * itemsize + B * C * 4),
        ),
    )(x_in)

    p = pooled.reshape(B, C) * jnp.float32(1.0 / HW)
    h = jnp.maximum(jnp.dot(p, w1t, precision=lax.Precision.HIGHEST) + b1r, 0.0)
    gate = jax.nn.sigmoid(jnp.dot(h, w2t, precision=lax.Precision.HIGHEST) + b2r)
    gate = gate.astype(jnp.float32).reshape(pooled_shape)

    out_flat = pl.pallas_call(
        _scale_kernel,
        out_shape=jax.ShapeDtypeStruct(x_in.shape, x.dtype),
        grid_spec=pltpu.PrefetchScalarGridSpec(
            num_scalar_prefetch=0,
            grid=(B, hw_steps),
            in_specs=[x_spec, p_spec],
            out_specs=x_spec,
        ),
        compiler_params=pltpu.CompilerParams(
            dimension_semantics=("parallel", "parallel"),
            vmem_limit_bytes=int(vmem_limit),
        ),
        cost_estimate=pl.CostEstimate(
            flops=int(B * C * HW),
            transcendentals=0,
            bytes_accessed=int(2 * B * C * HW * itemsize + B * C * 4),
        ),
    )(x_in, gate)
    return out_flat.reshape(x.shape)


# --------------------------------------------------------------------------- #
# Reference + tests                                                           #
# --------------------------------------------------------------------------- #

def _reference_nchw(x, w1, b1, w2, b2):
    x = x.astype(jnp.float32)
    pooled = jnp.mean(x, axis=(2, 3))
    h = jnp.maximum(jnp.dot(pooled, w1.T, precision=lax.Precision.HIGHEST) + b1, 0.0)
    e = jax.nn.sigmoid(jnp.dot(h, w2.T, precision=lax.Precision.HIGHEST) + b2)
    return x * e[:, :, None, None]


def _make_case(key, B, C, H, W, dtype=jnp.float32):
    hidden = max(1, C // 16)
    kx, k1, k2, k3, k4 = jax.random.split(key, 5)
    x = jax.random.normal(kx, (B, C, H, W), dtype=jnp.float32).astype(dtype)
    w1 = jax.random.normal(k1, (hidden, C), dtype=jnp.float32) * 0.1
    b1 = jax.random.normal(k2, (hidden,), dtype=jnp.float32) * 0.1
    w2 = jax.random.normal(k3, (C, hidden), dtype=jnp.float32) * 0.1
    b2 = jax.random.normal(k4, (C,), dtype=jnp.float32) * 0.1
    return x, w1, b1, w2, b2


def _check(out, ref, atol, rtol, name):
    assert out.shape == ref.shape, name
    ok = jnp.allclose(out.astype(jnp.float32), ref.astype(jnp.float32),
                      atol=atol, rtol=rtol)
    assert bool(ok), f"mismatch in {name}"


if __name__ == "__main__":
    keys = jax.random.split(jax.random.PRNGKey(0), 6)

    # 1) NCHW, HW multiple of 128 (lane-dense CHW single-pass path).
    x, w1, b1, w2, b2 = _make_case(keys[0], B=2, C=32, H=16, W=16)
    params = prepare_se_params(w1, b1, w2, b2)
    out = jax.block_until_ready(squeeze_excitation(x, *params))
    _check(out, _reference_nchw(x, w1, b1, w2, b2), 1e-5, 1e-5, "nchw_hw256")

    # 2) NCHW, lane-ragged spatial (HW=49), C=128: single-pass, no HBM transpose.
    x, w1, b1, w2, b2 = _make_case(keys[1], B=3, C=128, H=7, W=7)
    params = prepare_se_params(w1, b1, w2, b2)
    out = jax.block_until_ready(squeeze_excitation(x, *params))
    _check(out, _reference_nchw(x, w1, b1, w2, b2), 1e-5, 1e-5, "nchw_hw49")

    # 3) Channels-last input (B, H, W, C): native lane-dense C, no transposes.
    x, w1, b1, w2, b2 = _make_case(keys[2], B=4, C=128, H=7, W=7)
    x_nhwc = jnp.transpose(x, (0, 2, 3, 1))   # test-harness only
    params = prepare_se_params(w1, b1, w2, b2)
    out = jax.block_until_ready(squeeze_excitation(x_nhwc, *params, channels_last=True))
    ref = jnp.transpose(_reference_nchw(x, w1, b1, w2, b2), (0, 2, 3, 1))
    _check(out, ref, 1e-5, 1e-5, "nhwc_hw49")

    # 4) bf16 activations (gate applied in bf16; validated against f32 reference).
    x, w1, b1, w2, b2 = _make_case(keys[3], B=2, C=64, H=8, W=8, dtype=jnp.bfloat16)
    params = prepare_se_params(w1, b1, w2, b2)
    out = jax.block_until_ready(squeeze_excitation(x, *params))
    _check(out, _reference_nchw(x, w1, b1, w2, b2), 5e-2, 5e-2, "nchw_bf16")

    # 5) Forced two-pass fallback (NCHW): tiny budget -> HW-chunked pool+rescale.
    x, w1, b1, w2, b2 = _make_case(keys[4], B=2, C=64, H=32, W=32)
    params = prepare_se_params(w1, b1, w2, b2)
    out = jax.block_until_ready(
        squeeze_excitation(x, *params, vmem_budget_bytes=1 << 20))
    _check(out, _reference_nchw(x, w1, b1, w2, b2), 1e-5, 1e-5, "nchw_two_pass")

    # 6) Forced two-pass fallback, channels-last.
    x, w1, b1, w2, b2 = _make_case(keys[5], B=2, C=128, H=32, W=32)
    x_nhwc = jnp.transpose(x, (0, 2, 3, 1))
    params = prepare_se_params(w1, b1, w2, b2)
    out = jax.block_until_ready(
        squeeze_excitation(x_nhwc, *params, channels_last=True,
                           vmem_budget_bytes=1 << 20))
    ref = jnp.transpose(_reference_nchw(x, w1, b1, w2, b2), (0, 2, 3, 1))
    _check(out, ref, 1e-5, 1e-5, "nhwc_two_pass")

    print("KERNEL_OK")
</pallas_src>

<mosaic_0001>
module attributes {stable_mosaic.version = 11 : i64} {
  func.func @_se_kernel_chw(%arg0: i32, %arg1: memref<1x32x256xf32, #tpu.memory_space<vmem>>, %arg2: memref<32x2xf32, #tpu.memory_space<vmem>>, %arg3: memref<1x2xf32, #tpu.memory_space<vmem>>, %arg4: memref<2x32xf32, #tpu.memory_space<vmem>>, %arg5: memref<1x32xf32, #tpu.memory_space<vmem>>, %arg6: memref<1x32x256xf32, #tpu.memory_space<vmem>>) attributes {dimension_semantics = [#tpu.dimension_semantics<parallel>], iteration_bounds = array<i64: 2>, scalar_prefetch = 0 : i64, scratch_operands = 0 : i64, tpu.core_type = #tpu.core_type<tc>, window_params = [{transform_indices = @transform_0, window_bounds = array<i64: 1, 32, 256>}, {pipeline_mode = #tpu.pipeline_mode<synchronous>, transform_indices = @transform_1, window_bounds = array<i64: 32, 2>}, {pipeline_mode = #tpu.pipeline_mode<synchronous>, transform_indices = @transform_2, window_bounds = array<i64: 1, 2>}, {pipeline_mode = #tpu.pipeline_mode<synchronous>, transform_indices = @transform_3, window_bounds = array<i64: 2, 32>}, {pipeline_mode = #tpu.pipeline_mode<synchronous>, transform_indices = @transform_4, window_bounds = array<i64: 1, 32>}, {transform_indices = @transform_5, window_bounds = array<i64: 1, 32, 256>}]} {
    %cst = arith.constant 0.000000e+00 : f32
    %0 = vector.broadcast %cst : f32 to vector<1x32xf32>
    %c0 = arith.constant 0 : index
    %c0_0 = arith.constant 0 : index
    %c0_1 = arith.constant 0 : index
    %1 = vector.load %arg1[%c0, %c0_0, %c0_1] : memref<1x32x256xf32, #tpu.memory_space<vmem>>, vector<1x32x256xf32>
    %cst_2 = arith.constant dense<0.000000e+00> : vector<1x32xf32>
    %2 = vector.multi_reduction <add>, %1, %cst_2 [2] : vector<1x32x256xf32> to vector<1x32xf32>
    %3 = arith.addf %0, %2 : vector<1x32xf32>
    %cst_3 = arith.constant 3.906250e-03 : f32
    %4 = vector.broadcast %cst_3 : f32 to vector<1x32xf32>
    %5 = arith.mulf %3, %4 : vector<1x32xf32>
    %c0_4 = arith.constant 0 : index
    %c0_5 = arith.constant 0 : index
    %6 = vector.load %arg2[%c0_4, %c0_5] : memref<32x2xf32, #tpu.memory_space<vmem>>, vector<32x2xf32>
    %cst_6 = arith.constant dense<0.000000e+00> : vector<1x2xf32>
    %7 = tpu.matmul %5, %6, %cst_6 {dimension_numbers = #tpu.dot_dimension_numbers<[1], [0], [0], [1], [0, 0, 1, 1], [], []>, precision = #tpu.contract_precision<fp32>} : vector<1x32xf32>, vector<32x2xf32>, vector<1x2xf32> -> vector<1x2xf32>
    %c0_7 = arith.constant 0 : index
    %c0_8 = arith.constant 0 : index
    %8 = vector.load %arg3[%c0_7, %c0_8] : memref<1x2xf32, #tpu.memory_space<vmem>>, vector<1x2xf32>
    %9 = arith.addf %7, %8 : vector<1x2xf32>
    %cst_9 = arith.constant 0.000000e+00 : f32
    %10 = vector.broadcast %cst_9 : f32 to vector<1x2xf32>
    %11 = arith.maximumf %9, %10 : vector<1x2xf32>
    %c0_10 = arith.constant 0 : index
    %c0_11 = arith.constant 0 : index
    %12 = vector.load %arg4[%c0_10, %c0_11] : memref<2x32xf32, #tpu.memory_space<vmem>>, vector<2x32xf32>
    %cst_12 = arith.constant dense<0.000000e+00> : vector<1x32xf32>
    %13 = tpu.matmul %11, %12, %cst_12 {dimension_numbers = #tpu.dot_dimension_numbers<[1], [0], [0], [1], [0, 0, 1, 1], [], []>, precision = #tpu.contract_precision<fp32>} : vector<1x2xf32>, vector<2x32xf32>, vector<1x32xf32> -> vector<1x32xf32>
    %c0_13 = arith.constant 0 : index
    %c0_14 = arith.constant 0 : index
    %14 = vector.load %arg5[%c0_13, %c0_14] : memref<1x32xf32, #tpu.memory_space<vmem>>, vector<1x32xf32>
    %15 = arith.addf %13, %14 : vector<1x32xf32>
    %16 = arith.negf %15 : vector<1x32xf32>
    %17 = math.exp %16 : vector<1x32xf32>
    %cst_15 = arith.constant 1.000000e+00 : f32
    %18 = vector.broadcast %cst_15 : f32 to vector<1x32xf32>
    %19 = arith.addf %18, %17 : vector<1x32xf32>
    %20 = arith.divf %18, %19 : vector<1x32xf32>
    %21 = vector.shape_cast %20 : vector<1x32xf32> to vector<1x32x1xf32>
    %c0_16 = arith.constant 0 : index
    %c0_17 = arith.constant 0 : index
    %c0_18 = arith.constant 0 : index
    %22 = vector.load %arg1[%c0_16, %c0_17, %c0_18] : memref<1x32x256xf32, #tpu.memory_space<vmem>>, vector<1x32x256xf32>
    %23 = vector.broadcast %21 : vector<1x32x1xf32> to vector<1x32x256xf32>
    %24 = arith.mulf %22, %23 : vector<1x32x256xf32>
    %c0_19 = arith.constant 0 : index
    %c0_20 = arith.constant 0 : index
    %c0_21 = arith.constant 0 : index
    %25 = vector.load %arg6[%c0_19, %c0_20, %c0_21] : memref<1x32x256xf32, #tpu.memory_space<vmem>>, vector<1x32x256xf32>
    tpu.vector_store %arg6[%c0_19, %c0_20, %c0_21], %24 {strides = array<i32>} : memref<1x32x256xf32, #tpu.memory_space<vmem>>, vector<1x32x256xf32>,
    return
  }
  func.func @transform_0(%arg0: i32) -> (i32, i32, i32) {
    %c0_i32 = arith.constant 0 : i32
    %c0_i32_0 = arith.constant 0 : i32
    %c0_i32_1 = arith.constant 0 : i32
    return %arg0, %c0_i32, %c0_i32_0 : i32, i32, i32
  }
  func.func @transform_1(%arg0: i32) -> (i32, i32) {
    %c0_i32 = arith.constant 0 : i32
    %c0_i32_0 = arith.constant 0 : i32
    %c0_i32_1 = arith.constant 0 : i32
    return %c0_i32, %c0_i32_0 : i32, i32
  }
  func.func @transform_2(%arg0: i32) -> (i32, i32) {
    %c0_i32 = arith.constant 0 : i32
    %c0_i32_0 = arith.constant 0 : i32
    %c0_i32_1 = arith.constant 0 : i32
    return %c0_i32, %c0_i32_0 : i32, i32
  }
  func.func @transform_3(%arg0: i32) -> (i32, i32) {
    %c0_i32 = arith.constant 0 : i32
    %c0_i32_0 = arith.constant 0 : i32
    %c0_i32_1 = arith.constant 0 : i32
    return %c0_i32, %c0_i32_0 : i32, i32
  }
  func.func @transform_4(%arg0: i32) -> (i32, i32) {
    %c0_i32 = arith.constant 0 : i32
    %c0_i32_0 = arith.constant 0 : i32
    %c0_i32_1 = arith.constant 0 : i32
    return %c0_i32, %c0_i32_0 : i32, i32
  }
  func.func @transform_5(%arg0: i32) -> (i32, i32, i32) {
    %c0_i32 = arith.constant 0 : i32
    %c0_i32_0 = arith.constant 0 : i32
    %c0_i32_1 = arith.constant 0 : i32
    return %arg0, %c0_i32, %c0_i32_0 : i32, i32, i32
  }
}

</mosaic_0001>

<llo_original>
// kernel: tpu_custom_call.1
$region0: #{tpu_custom_call.1}
  #allocation0 [shape = 'u32[]', space=smem, size = 0x4, offset = 0x4, fixed_abs, tag = 'smem constant byte address 0x4 - core index']
  #allocation1 [shape = 'u32[144,128]{1,0:T(1,128)}', space=vmem, size = 0x12000, scoped, tag = 'internal scratch']
  %s0 = inlined_call_operand.hbm [shape: f32[2,32,256], index: 0, kind: input, shape index: {}]
  %s1 = inlined_call_operand.vmem [shape: f32[32,2], index: 1, kind: input, shape index: {}]
  %s2 = inlined_call_operand.vmem [shape: f32[1,2], index: 2, kind: input, shape index: {}]
  %s3 = inlined_call_operand.vmem [shape: f32[2,32], index: 3, kind: input, shape index: {}]
  %s4 = inlined_call_operand.vmem [shape: f32[1,32], index: 4, kind: input, shape index: {}]
  %s5 = inlined_call_operand.hbm [shape: f32[2,32,256], index: 5, kind: output, shape index: {}]
  %s6 = sld [smem:[#allocation0]]
  $region57: #{tpu_custom_call.1} parent=0
    _
  %s8 = ssub.s32 1, %s6
  %s9 = scalar_select 0, %s8, %s6
  $region1: #{tpu_custom_call.1} parent=0
    #allocation2 [shape = 'u8[65536]{0}', space=vmem, size = 0x10000, scoped, tag = 'input window, operand 0']
    #allocation3 [shape = 's32[2]{0}', space=sflag, size = 0x8, scoped, tag = 'scoped memory for tpu_custom_call.1']
    #allocation4 [shape = 's32[2]{0}', space=sflag, size = 0x8, scoped, tag = 'scoped memory for tpu_custom_call.1']
    #allocation5 [shape = 'u8[65536]{0}', space=vmem, size = 0x10000, scoped, tag = 'output window, operand 0']
    %10 = vsyncpa [#allocation3], 0
    %s11 = scalar_lea.sflag [#allocation3], 1
    %12 = vsyncpa %s11, 0
    %13 = vsyncpa [#allocation4], 0
    %s14 = scalar_lea.sflag [#allocation4], 1
    %15 = vsyncpa %s14, 0
    loop: start=0, step=1, limit=4
    $region2: #{tpu_custom_call.1} parent=1 // loop_pre_header
      _
    $region3: #{tpu_custom_call.1} parent=1 // loop_header
      %s17 = sphi 0, %s21
      %p18 = scmp.ge.s32.totalorder %s17, 4
      %s27 = sphi 0, %s29
      %s30 = sphi 0, %s27
      %s31 = sphi 0, %s30
      %s47 = sphi 0, %s31
      %s51 = sphi 0, %s51
      %s53 = sphi 0, %s51
      %s54 = sphi 0, %s53
      %s68 = sphi 0, %s54
      %s72 = sphi 0, %s72
      %s74 = sphi 0, %s72
      %s75 = sphi 0, %s74
      %s89 = sphi 0, %s75
      %s93 = sphi 0, %s93
      %s95 = sphi 0, %s93
      %s96 = sphi 0, %s95
      %s110 = sphi 0, %s96
      %s114 = sphi 0, %s114
      %s116 = sphi 0, %s114
      %s117 = sphi 0, %s116
      %s131 = sphi 0, %s117
      %s137 = sphi 0, %s139
      %s140 = sphi 0, %s137
      %s141 = sphi 0, %s140
      %s157 = sphi 0, %s141
    $region4: #{tpu_custom_call.1} parent=1 // loop_header_branch
      %20 = sbr.rel (%p18) target = $region8
    $region5: #{tpu_custom_call.1} parent=1 // loop_body
      %s22 = ssub.s32 %s17, 1
      %s23 = ssub.s32 %s17, 2
      %s24 = sadd.s32 %s17, 1
      %s25 = ssub.s32 %s17, %s24
      %p26 = scmp.eq.s32.totalorder %s25, 0
      %s28 = sadd.s32 %s27, 1
      %s29 = scalar_select %p26, %s27, %s28
      %p32 = pneg %p26
      %p33 = scmp.eq.s32.totalorder %s17, 1
      %p34 = por %p32, %p33
      %p35 = scmp.ne.s32.totalorder %s27, %s30
      %p36 = scmp.eq.s32.totalorder %s17, 0
      %p37 = por %p35, %p36
      %p38 = scmp.ne.s32.totalorder %s27, %s30
      %p39 = scmp.eq.s32.totalorder %s22, 1
      %p40 = por %p38, %p39
      %p41 = scmp.ne.s32.totalorder %s30, %s31
      %p42 = scmp.eq.s32.totalorder %s22, 0
      %p43 = por %p41, %p42
      %p44 = scmp.ne.s32.totalorder %s30, %s31
      %p45 = scmp.eq.s32.totalorder %s23, 1
      %p46 = por %p44, %p45
      %p48 = scmp.ne.s32.totalorder %s31, %s47
      %p49 = scmp.eq.s32.totalorder %s23, 0
      %p50 = por %p48, %p49
      %s52 = sadd.s32 %s51, 1
      %p55 = scmp.eq.s32.totalorder %s17, 1
      %p56 = scmp.ne.s32.totalorder %s51, %s53
      %p57 = scmp.eq.s32.totalorder %s17, 0
      %p58 = por %p56, %p57
      %p59 = scmp.ne.s32.totalorder %s51, %s53
      %p60 = scmp.eq.s32.totalorder %s22, 1
      %p61 = por %p59, %p60
      %p62 = scmp.ne.s32.totalorder %s53, %s54
      %p63 = scmp.eq.s32.totalorder %s22, 0
      %p64 = por %p62, %p63
      %p65 = scmp.ne.s32.totalorder %s53, %s54
      %p66 = scmp.eq.s32.totalorder %s23, 1
      %p67 = por %p65, %p66
      %p69 = scmp.ne.s32.totalorder %s54, %s68
      %p70 = scmp.eq.s32.totalorder %s23, 0
      %p71 = por %p69, %p70
      %s73 = sadd.s32 %s72, 1
      %p76 = scmp.eq.s32.totalorder %s17, 1
      %p77 = scmp.ne.s32.totalorder %s72, %s74
      %p78 = scmp.eq.s32.totalorder %s17, 0
      %p79 = por %p77, %p78
      %p80 = scmp.ne.s32.totalorder %s72, %s74
      %p81 = scmp.eq.s32.totalorder %s22, 1
      %p82 = por %p80, %p81
      %p83 = scmp.ne.s32.totalorder %s74, %s75
      %p84 = scmp.eq.s32.totalorder %s22, 0
      %p85 = por %p83, %p84
      %p86 = scmp.ne.s32.totalorder %s74, %s75
      %p87 = scmp.eq.s32.totalorder %s23, 1
      %p88 = por %p86, %p87
      %p90 = scmp.ne.s32.totalorder %s75, %s89
      %p91 = scmp.eq.s32.totalorder %s23, 0
      %p92 = por %p90, %p91
      %s94 = sadd.s32 %s93, 1
      %p97 = scmp.eq.s32.totalorder %s17, 1
      %p98 = scmp.ne.s32.totalorder %s93, %s95
      %p99 = scmp.eq.s32.totalorder %s17, 0
      %p100 = por %p98, %p99
      %p101 = scmp.ne.s32.totalorder %s93, %s95
      %p102 = scmp.eq.s32.totalorder %s22, 1
      %p103 = por %p101, %p102
      %p104 = scmp.ne.s32.totalorder %s95, %s96
      %p105 = scmp.eq.s32.totalorder %s22, 0
      %p106 = por %p104, %p105
      %p107 = scmp.ne.s32.totalorder %s95, %s96
      %p108 = scmp.eq.s32.totalorder %s23, 1
      %p109 = por %p107, %p108
      %p111 = scmp.ne.s32.totalorder %s96, %s110
      %p112 = scmp.eq.s32.totalorder %s23, 0
      %p113 = por %p111, %p112
      %s115 = sadd.s32 %s114, 1
      %p118 = scmp.eq.s32.totalorder %s17, 1
      %p119 = scmp.ne.s32.totalorder %s114, %s116
      %p120 = scmp.eq.s32.totalorder %s17, 0
      %p121 = por %p119, %p120
      %p122 = scmp.ne.s32.totalorder %s114, %s116
      %p123 = scmp.eq.s32.totalorder %s22, 1
      %p124 = por %p122, %p123
      %p125 = scmp.ne.s32.totalorder %s116, %s117
      %p126 = scmp.eq.s32.totalorder %s22, 0
      %p127 = por %p125, %p126
      %p128 = scmp.ne.s32.totalorder %s116, %s117
      %p129 = scmp.eq.s32.totalorder %s23, 1
      %p130 = por %p128, %p129
      %p132 = scmp.ne.s32.totalorder %s117, %s131
      %p133 = scmp.eq.s32.totalorder %s23, 0
      %p134 = por %p132, %p133
      %s135 = ssub.s32 %s17, %s24
      %p136 = scmp.eq.s32.totalorder %s135, 0
      %s138 = sadd.s32 %s137, 1
      %s139 = scalar_select %p136, %s137, %s138
      %p142 = pneg %p136
      %p143 = scmp.eq.s32.totalorder %s17, 1
      %p144 = por %p142, %p143
      %p145 = scmp.ne.s32.totalorder %s137, %s140
      %p146 = scmp.eq.s32.totalorder %s17, 0
      %p147 = por %p145, %p146
      %p148 = scmp.ne.s32.totalorder %s137, %s140
      %p149 = scmp.eq.s32.totalorder %s22, 1
      %p150 = por %p148, %p149
      %p151 = scmp.ne.s32.totalorder %s140, %s141
      %p152 = scmp.eq.s32.totalorder %s22, 0
      %p153 = por %p151, %p152
      %p154 = scmp.ne.s32.totalorder %s140, %s141
      %p155 = scmp.eq.s32.totalorder %s23, 1
      %p156 = por %p154, %p155
      %p158 = scmp.ne.s32.totalorder %s141, %s157
      %p159 = scmp.eq.s32.totalorder %s23, 0
      %p160 = por %p158, %p159
      %p161 = scmp.le.s32.totalorder 1, %s17
      %p162 = scmp.lt.s32.totalorder %s17, 3
      %p163 = pnand %p161, %p162
      %p164 = pneg %p163
      // Predicated region
      $region9: #{tpu_custom_call.1} parent=5 // pred_check
        _
      $region10: #{tpu_custom_call.1} parent=5 // pred_check_branch
        %166 = sbr.rel (%p163) target = $region12
      $region11: #{tpu_custom_call.1} parent=5 // pred_region
        %s167 = ssub.s32 %s17, 1
        // Predicated region
        $region13: #{tpu_custom_call.1} parent=11 // pred_check
          %p168 = pneg %p64
        $region14: #{tpu_custom_call.1} parent=11 // pred_check_branch
          %170 = sbr.rel (%p168) target = $region16
        $region15: #{tpu_custom_call.1} parent=11 // pred_region
          _
        $region16: #{tpu_custom_call.1} parent=11 // pred_fallthru
          _
        // Predicated region
        $region17: #{tpu_custom_call.1} parent=11 // pred_check
          %p171 = pneg %p85
        $region18: #{tpu_custom_call.1} parent=11 // pred_check_branch
          %173 = sbr.rel (%p171) target = $region20
        $region19: #{tpu_custom_call.1} parent=11 // pred_region
          _
        $region20: #{tpu_custom_call.1} parent=11 // pred_fallthru
          _
        // Predicated region
        $region21: #{tpu_custom_call.1} parent=11 // pred_check
          %p174 = pneg %p106
        $region22: #{tpu_custom_call.1} parent=11 // pred_check_branch
          %176 = sbr.rel (%p174) target = $region24
        $region23: #{tpu_custom_call.1} parent=11 // pred_region
          _
        $region24: #{tpu_custom_call.1} parent=11 // pred_fallthru
          _
        // Predicated region
        $region25: #{tpu_custom_call.1} parent=11 // pred_check
          %p177 = pneg %p127
        $region26: #{tpu_custom_call.1} parent=11 // pred_check_branch
          %179 = sbr.rel (%p177) target = $region28
        $region27: #{tpu_custom_call.1} parent=11 // pred_region
          _
        $region28: #{tpu_custom_call.1} parent=11 // pred_fallthru
          _
      $region12: #{tpu_custom_call.1} parent=5 // pred_fallthru
        _
      %p180 = scmp.lt.s32.totalorder %s17, 2
      // Predicated region
      $region29: #{tpu_custom_call.1} parent=5 // pred_check
        %p181 = pneg %p180
      $region30: #{tpu_custom_call.1} parent=5 // pred_check_branch
        %183 = sbr.rel (%p181) target = $region32
      $region31: #{tpu_custom_call.1} parent=5 // pred_region
        // Predicated region
        $region33: #{tpu_custom_call.1} parent=31 // pred_check
          %p184 = pneg %p37
        $region34: #{tpu_custom_call.1} parent=31 // pred_check_branch
          %186 = sbr.rel (%p184) target = $region36
        $region35: #{tpu_custom_call.1} parent=31 // pred_region
          %s187 = sand.u32 %s27, 1
          %s188 = scalar_lea.sflag [#allocation3], %s187
          %s189 = sand.u32 %s27, 1
          %s190 = smul.addr %s189, 64
          %s191 = scalar_lea.vmem [#allocation2], %s190
          %s193 = ssub.s32 1024, 1024
          %194 = vsyncadd %s188, %s193
          %s195 = smul.addr %s17, 8
          %s196 = smul.addr %s195, 128
          %s197 = scalar_lea.hbm %s0, %s196
          %s198 = sshll.u32 %s191, 4
          %s199 = int_to_ptr.vmem [resolvable:$true] %s198
          %204 = dma.hbm_to_vmem [thread:$0]  %s197, 1024, %s199, %s188, 256, 256, 16
        $region36: #{tpu_custom_call.1} parent=31 // pred_fallthru
          _
      $region32: #{tpu_custom_call.1} parent=5 // pred_fallthru
        _
      %p205 = scmp.le.s32.totalorder 1, %s17
      %p206 = scmp.lt.s32.totalorder %s17, 3
      %p207 = pnand %p205, %p206
      %p208 = pneg %p207
      // Predicated region
      $region37: #{tpu_custom_call.1} parent=5 // pred_check
        _
      $region38: #{tpu_custom_call.1} parent=5 // pred_check_branch
        %210 = sbr.rel (%p207) target = $region40
      $region39: #{tpu_custom_call.1} parent=5 // pred_region
        %s211 = ssub.s32 %s17, 1
        %s212 = sand.u32 %s30, 1
        %s213 = scalar_lea.sflag [#allocation3], %s212
        %s214 = sand.u32 %s30, 1
        %s215 = smul.addr %s214, 64
        %s216 = scalar_lea.vmem [#allocation2], %s215
        // Predicated region
        $region41: #{tpu_custom_call.1} parent=39 // pred_check
          %p217 = pneg %p43
        $region42: #{tpu_custom_call.1} parent=39 // pred_check_branch
          %219 = sbr.rel (%p217) target = $region44
        $region43: #{tpu_custom_call.1} parent=39 // pred_region
          %220 = dma.done %s213, 1024
        $region44: #{tpu_custom_call.1} parent=39 // pred_fallthru
          _
        %s221 = sand.u32 %s30, 1
        %s222 = scalar_lea.sflag [#allocation3], %s221
        %s223 = sand.u32 %s30, 1
        %s224 = smul.addr %s223, 64
        %s225 = scalar_lea.vmem [#allocation2], %s224
        %p226 = pneg %p43
        %p227 = pneg %p40
        %p228 = pneg %p64
        %p229 = pneg %p61
        %p230 = pneg %p85
        %p231 = pneg %p82
        %p232 = pneg %p106
        %p233 = pneg %p103
        %p234 = pneg %p127
        %p235 = pneg %p124
        %p236 = pneg %p153
        %p237 = pneg %p150
        %s238 = sand.u32 %s140, 1
        %s239 = scalar_lea.sflag [#allocation4], %s238
        %s240 = sand.u32 %s140, 1
        %s241 = smul.addr %s240, 64
        %s242 = scalar_lea.vmem [#allocation5], %s241
        %v243 = vld [vmem:[%s216] sm:$0xff]
        %v244 = vld [vmem:[%s216 + $0x8] sm:$0xff]
        %v245 = vld [vmem:[%s216 + $0x10] sm:$0xff]
        %v246 = vld [vmem:[%s216 + $0x18] sm:$0xff]
        %v247 = vld [vmem:[%s216 + $0x20] sm:$0xff]
        %v248 = vld [vmem:[%s216 + $0x28] sm:$0xff]
        %v249 = vld [vmem:[%s216 + $0x30] sm:$0xff]
        %v250 = vld [vmem:[%s216 + $0x38] sm:$0xff]
        %v251 = vadd.f32 %v243, %v244
        %252 = vadd.xlane.f32.xlu0 %v251
        %v253 = vpop.xlane.xlu0 %252
        %v254 = vadd.f32 %v245, %v246
        %255 = vadd.xlane.f32.xlu0 %v254
        %v256 = vpop.xlane.xlu0 %255
        %v257 = vadd.f32 %v247, %v248
        %258 = vadd.xlane.f32.xlu0 %v257
        %v259 = vpop.xlane.xlu0 %258
        %v260 = vadd.f32 %v249, %v250
        %261 = vadd.xlane.f32.xlu0 %v260
        %v262 = vpop.xlane.xlu0 %261
        %v263 = vadd.f32 %v253, 0.0
        %v264 = vadd.f32 %v256, 0.0
        %v265 = vadd.f32 %v259, 0.0
        %v266 = vadd.f32 %v262, 0.0
        %v267 = vmul.f32 %v263, 0.00390625
        %v268 = vmul.f32 %v264, 0.00390625
        %v269 = vmul.f32 %v265, 0.00390625
        %v270 = vmul.f32 %v266, 0.00390625
        %v271 = vld [vmem:[%s1] sm:$0xff]
        %v272 = vld [vmem:[%s1 + $0x8] sm:$0xff]
        %v273 = vld [vmem:[%s1 + $0x10] sm:$0xff]
        %v274 = vld [vmem:[%s1 + $0x18] sm:$0xff]
        %v275 = vld [vmem:[%s2] sm:$0x1]
        %v280 = vlaneseq
        %v281 = vand.u32 %v280, 127
        %v282 = vlaneseq
        %v283 = vshrl.u32 %v282, 7
        %v284 = vsub.s32 %v281, %v283
        %v285 = vrot.slane %v267, %v284
        %v286 = vadd.s32 %v281, 4294967288
        %v287 = vlaneseq
        %v288 = vshrl.u32 %v287, 7
        %v289 = vsub.s32 %v286, %v288
        %v290 = vrot.slane %v268, %v289
        %vm291 = vcmask 130112
        %v292 = vsel %vm291, %v290, %v285
        %v293 = vadd.s32 %v281, 4294967280
        %v294 = vlaneseq
        %v295 = vshrl.u32 %v294, 7
        %v296 = vsub.s32 %v293, %v295
        %v297 = vrot.slane %v269, %v296
        %vm298 = vcmask 195712
        %v299 = vsel %vm298, %v297, %v292
        %v300 = vadd.s32 %v281, 4294967272
        %v301 = vlaneseq
        %v302 = vshrl.u32 %v301, 7
        %v303 = vsub.s32 %v300, %v302
        %v304 = vrot.slane %v270, %v303
        %vm305 = vcmask 261312
        %v306 = vsel %vm305, %v304, %v299
        %vm307 = vcmask 261120
        %v308 = vsel %vm307, %v306, 0
        %310 = vmatprep.subr.mxu0 0.0
        %v311 = vand.u32 %v271, 4294901760
        %312 = vmatpush1.msra.mxu0 %v311
        %313 = vmatprep.subr.mxu0 0.0
        %v314 = vand.u32 %v272, 4294901760
        %315 = vmatpush1.msra.mxu0 %v314
        %316 = vmatprep.subr.mxu0 0.0
        %v317 = vand.u32 %v273, 4294901760
        %318 = vmatpush1.msra.mxu0 %v317
        %319 = vmatprep.subr.mxu0 0.0
        %v320 = vand.u32 %v274, 4294901760
        %321 = vmatpush1.msra.mxu0 %v320
        %322 = vmatprep.subr.mxu0 0.0
        %323 = vmatpush1.msra.mxu0 0.0
        %324 = vmatprep.subr.mxu0 0.0
        %325 = vmatpush1.msra.mxu0 0.0
        %326 = vmatprep.subr.mxu0 0.0
        %327 = vmatpush1.msra.mxu0 0.0
        %328 = vmatprep.subr.mxu0 0.0
        %329 = vmatpush1.msra.mxu0 0.0
        %330 = vmatprep.subr.mxu0 0.0
        %331 = vmatpush1.msra.mxu0 0.0
        %332 = vmatprep.subr.mxu0 0.0
        %333 = vmatpush1.msra.mxu0 0.0
        %334 = vmatprep.subr.mxu0 0.0
        %335 = vmatpush1.msra.mxu0 0.0
        %336 = vmatprep.subr.mxu0 0.0
        %337 = vmatpush1.msra.mxu0 0.0
        %338 = vmatprep.subr.mxu0 0.0
        %339 = vmatpush1.msra.mxu0 0.0
        %340 = vmatprep.subr.mxu0 0.0
        %341 = vmatpush1.msra.mxu0 0.0
        %342 = vmatprep.subr.mxu0 0.0
        %343 = vmatpush1.msra.mxu0 0.0
        %344 = vmatprep.subr.mxu0 0.0
        %345 = vmatpush1.msra.mxu0 0.0
        %346 = vmatprep.subr.mxu0 0.0
        %347 = vmatpush1.msra.mxu0 0.0
        %348 = vmatprep.subr.mxu0 0.0
        %349 = vmatpush1.msra.mxu0 0.0
        %350 = vmatprep.subr.mxu0 0.0
        %351 = vmatpush1.msra.mxu0 0.0
        %352 = vmatprep.subr.mxu0 0.0
        %353 = vmatpush1.msra.mxu0 0.0
        %354 = vmatprep.subr.mxu0 0.0
        %355 = vmatpush1.msra.mxu0 0.0
        %356 = vmatprep.subr.mxu0 0.0
        %357 = vmatpush1.msra.mxu0 0.0
        %358 = vmatprep.subr.mxu0 0.0
        %359 = vmatpush1.msra.mxu0 0.0
        %360 = vmatprep.subr.mxu0 0.0
        %361 = vmatpush1.msra.mxu0 0.0
        %362 = vmatprep.subr.mxu0 0.0
        %363 = vmatpush1.msra.mxu0 0.0
        %364 = vmatprep.subr.mxu0 0.0
        %365 = vmatpush1.msra.mxu0 0.0
        %366 = vmatprep.subr.mxu0 0.0
        %367 = vmatpush1.msra.mxu0 0.0
        %368 = vmatprep.subr.mxu0 0.0
        %369 = vmatpush1.msra.mxu0 0.0
        %370 = vmatprep.subr.mxu0 0.0
        %371 = vmatpush1.msra.mxu0 0.0
        %372 = vmatprep.subr.mxu0 0.0
        %373 = vmatpush1.msra.mxu0 0.0
        %374 = vmatprep.subr.mxu0 0.0
        %375 = vmatpush1.msra.mxu0 0.0
        %376 = vmatprep.subr.mxu0 0.0
        %377 = vmatpush1.msra.mxu0 0.0
        %378 = vmatprep.mubr.f32.mxu0 0.0
        %v379 = vand.u32 %v308, 4294901760
        %v380 = vsub.f32 %v308, %v379
        %v381 = vand.u32 %v380, 4294901760
        %v382 = vsub.f32 %v380, %v381
        %v383 = vand.u32 %v382, 4294901760
        %384 = vmatmul.mubr.f32.gmra.mrb[0].mxu0 %v383
        %v385 = vpop.f32.mrb[0].mxu0
        %v386 = vadd.f32 %v275, %v385
        %v387 = vpop.f32.mrb[0].mxu0
        %388 = vdwg.mxu0
        %389 = vmatprep.subr.mxu0 0.0
        %v390 = vand.u32 %v271, 4294901760
        %v391 = vsub.f32 %v271, %v390
        %v392 = vand.u32 %v391, 4294901760
        %v393 = vsub.f32 %v391, %v392
        %v394 = vand.u32 %v393, 4294901760
        %395 = vmatpush1.msra.mxu0 %v394
        %396 = vmatprep.subr.mxu0 0.0
        %v397 = vand.u32 %v272, 4294901760
        %v398 = vsub.f32 %v272, %v397
        %v399 = vand.u32 %v398, 4294901760
        %v400 = vsub.f32 %v398, %v399
        %v401 = vand.u32 %v400, 4294901760
        %402 = vmatpush1.msra.mxu0 %v401
        %403 = vmatprep.subr.mxu0 0.0
        %v404 = vand.u32 %v273, 4294901760
        %v405 = vsub.f32 %v273, %v404
        %v406 = vand.u32 %v405, 4294901760
        %v407 = vsub.f32 %v405, %v406
        %v408 = vand.u32 %v407, 4294901760
        %409 = vmatpush1.msra.mxu0 %v408
        %410 = vmatprep.subr.mxu0 0.0
        %v411 = vand.u32 %v274, 4294901760
        %v412 = vsub.f32 %v274, %v411
        %v413 = vand.u32 %v412, 4294901760
        %v414 = vsub.f32 %v412, %v413
        %v415 = vand.u32 %v414, 4294901760
        %416 = vmatpush1.msra.mxu0 %v415
        %417 = vmatprep.subr.mxu0 0.0
        %418 = vmatpush1.msra.mxu0 0.0
        %419 = vmatprep.subr.mxu0 0.0
        %420 = vmatpush1.msra.mxu0 0.0
        %421 = vmatprep.subr.mxu0 0.0
        %422 = vmatpush1.msra.mxu0 0.0
        %423 = vmatprep.subr.mxu0 0.0
        %424 = vmatpush1.msra.mxu0 0.0
        %425 = vmatprep.subr.mxu0 0.0
        %426 = vmatpush1.msra.mxu0 0.0
        %427 = vmatprep.subr.mxu0 0.0
        %428 = vmatpush1.msra.mxu0 0.0
        %429 = vmatprep.subr.mxu0 0.0
        %430 = vmatpush1.msra.mxu0 0.0
        %431 = vmatprep.subr.mxu0 0.0
        %432 = vmatpush1.msra.mxu0 0.0
        %433 = vmatprep.subr.mxu0 0.0
        %434 = vmatpush1.msra.mxu0 0.0
        %435 = vmatprep.subr.mxu0 0.0
        %436 = vmatpush1.msra.mxu0 0.0
        %437 = vmatprep.subr.mxu0 0.0
        %438 = vmatpush1.msra.mxu0 0.0
        %439 = vmatprep.subr.mxu0 0.0
        %440 = vmatpush1.msra.mxu0 0.0
        %441 = vmatprep.subr.mxu0 0.0
        %442 = vmatpush1.msra.mxu0 0.0
        %443 = vmatprep.subr.mxu0 0.0
        %444 = vmatpush1.msra.mxu0 0.0
        %445 = vmatprep.subr.mxu0 0.0
        %446 = vmatpush1.msra.mxu0 0.0
        %447 = vmatprep.subr.mxu0 0.0
        %448 = vmatpush1.msra.mxu0 0.0
        %449 = vmatprep.subr.mxu0 0.0
        %450 = vmatpush1.msra.mxu0 0.0
        %451 = vmatprep.subr.mxu0 0.0
        %452 = vmatpush1.msra.mxu0 0.0
        %453 = vmatprep.subr.mxu0 0.0
        %454 = vmatpush1.msra.mxu0 0.0
        %455 = vmatprep.subr.mxu0 0.0
        %456 = vmatpush1.msra.mxu0 0.0
        %457 = vmatprep.subr.mxu0 0.0
        %458 = vmatpush1.msra.mxu0 0.0
        %459 = vmatprep.subr.mxu0 0.0
        %460 = vmatpush1.msra.mxu0 0.0
        %461 = vmatprep.subr.mxu0 0.0
        %462 = vmatpush1.msra.mxu0 0.0
        %463 = vmatprep.subr.mxu0 0.0
        %464 = vmatpush1.msra.mxu0 0.0
        %465 = vmatprep.subr.mxu0 0.0
        %466 = vmatpush1.msra.mxu0 0.0
        %467 = vmatprep.subr.mxu0 0.0
        %468 = vmatpush1.msra.mxu0 0.0
        %469 = vmatprep.subr.mxu0 0.0
        %470 = vmatpush1.msra.mxu0 0.0
        %471 = vmatprep.subr.mxu0 0.0
        %472 = vmatpush1.msra.mxu0 0.0
        %473 = vmatprep.mubr.f32.mxu0 0.0
        %v474 = vand.u32 %v308, 4294901760
        %475 = vmatmul.mubr.f32.gmra.mrb[0].mxu0 %v474
        %v476 = vpop.f32.mrb[0].mxu0
        %v477 = vadd.f32 %v386, %v476
        %v478 = vpop.f32.mrb[0].mxu0
        %479 = vdwg.mxu0
        %480 = vmatprep.subr.mxu0 0.0
        %v481 = vand.u32 %v271, 4294901760
        %v482 = vsub.f32 %v271, %v481
        %483 = vmatpush1.msra.mxu0 %v482
        %484 = vmatprep.subr.mxu0 0.0
        %v485 = vand.u32 %v272, 4294901760
        %v486 = vsub.f32 %v272, %v485
        %487 = vmatpush1.msra.mxu0 %v486
        %488 = vmatprep.subr.mxu0 0.0
        %v489 = vand.u32 %v273, 4294901760
        %v490 = vsub.f32 %v273, %v489
        %491 = vmatpush1.msra.mxu0 %v490
        %492 = vmatprep.subr.mxu0 0.0
        %v493 = vand.u32 %v274, 4294901760
        %v494 = vsub.f32 %v274, %v493
        %495 = vmatpush1.msra.mxu0 %v494
        %496 = vmatprep.subr.mxu0 0.0
        %497 = vmatpush1.msra.mxu0 0.0
        %498 = vmatprep.subr.mxu0 0.0
        %499 = vmatpush1.msra.mxu0 0.0
        %500 = vmatprep.subr.mxu0 0.0
        %501 = vmatpush1.msra.mxu0 0.0
        %502 = vmatprep.subr.mxu0 0.0
        %503 = vmatpush1.msra.mxu0 0.0
        %504 = vmatprep.subr.mxu0 0.0
        %505 = vmatpush1.msra.mxu0 0.0
        %506 = vmatprep.subr.mxu0 0.0
        %507 = vmatpush1.msra.mxu0 0.0
        %508 = vmatprep.subr.mxu0 0.0
        %509 = vmatpush1.msra.mxu0 0.0
        %510 = vmatprep.subr.mxu0 0.0
        %511 = vmatpush1.msra.mxu0 0.0
        %512 = vmatprep.subr.mxu0 0.0
        %513 = vmatpush1.msra.mxu0 0.0
        %514 = vmatprep.subr.mxu0 0.0
        %515 = vmatpush1.msra.mxu0 0.0
        %516 = vmatprep.subr.mxu0 0.0
        %517 = vmatpush1.msra.mxu0 0.0
        %518 = vmatprep.subr.mxu0 0.0
        %519 = vmatpush1.msra.mxu0 0.0
        %520 = vmatprep.subr.mxu0 0.0
        %521 = vmatpush1.msra.mxu0 0.0
        %522 = vmatprep.subr.mxu0 0.0
        %523 = vmatpush1.msra.mxu0 0.0
        %524 = vmatprep.subr.mxu0 0.0
        %525 = vmatpush1.msra.mxu0 0.0
        %526 = vmatprep.subr.mxu0 0.0
        %527 = vmatpush1.msra.mxu0 0.0
        %528 = vmatprep.subr.mxu0 0.0
        %529 = vmatpush1.msra.mxu0 0.0
        %530 = vmatprep.subr.mxu0 0.0
        %531 = vmatpush1.msra.mxu0 0.0
        %532 = vmatprep.subr.mxu0 0.0
        %533 = vmatpush1.msra.mxu0 0.0
        %534 = vmatprep.subr.mxu0 0.0
        %535 = vmatpush1.msra.mxu0 0.0
        %536 = vmatprep.subr.mxu0 0.0
        %537 = vmatpush1.msra.mxu0 0.0
        %538 = vmatprep.subr.mxu0 0.0
        %539 = vmatpush1.msra.mxu0 0.0
        %540 = vmatprep.subr.mxu0 0.0
        %541 = vmatpush1.msra.mxu0 0.0
        %542 = vmatprep.subr.mxu0 0.0
        %543 = vmatpush1.msra.mxu0 0.0
        %544 = vmatprep.subr.mxu0 0.0
        %545 = vmatpush1.msra.mxu0 0.0
        %546 = vmatprep.subr.mxu0 0.0
        %547 = vmatpush1.msra.mxu0 0.0
        %548 = vmatprep.subr.mxu0 0.0
        %549 = vmatpush1.msra.mxu0 0.0
        %550 = vmatprep.subr.mxu0 0.0
        %551 = vmatpush1.msra.mxu0 0.0
        %552 = vmatprep.mubr.f32.mxu0 0.0
        %v553 = vand.u32 %v308, 4294901760
        %v554 = vsub.f32 %v308, %v553
        %555 = vmatmul.mubr.f32.gmra.mrb[0].mxu0 %v554
        %v556 = vpop.f32.mrb[0].mxu0
        %v557 = vadd.f32 %v477, %v556
        %v558 = vpop.f32.mrb[0].mxu0
        %559 = vdwg.mxu0
        %560 = vmatprep.subr.mxu0 0.0
        %v561 = vand.u32 %v271, 4294901760
        %562 = vmatpush1.msra.mxu0 %v561
        %563 = vmatprep.subr.mxu0 0.0
        %v564 = vand.u32 %v272, 4294901760
        %565 = vmatpush1.msra.mxu0 %v564
        %566 = vmatprep.subr.mxu0 0.0
        %v567 = vand.u32 %v273, 4294901760
        %568 = vmatpush1.msra.mxu0 %v567
        %569 = vmatprep.subr.mxu0 0.0
        %v570 = vand.u32 %v274, 4294901760
        %571 = vmatpush1.msra.mxu0 %v570
        %572 = vmatprep.subr.mxu0 0.0
        %573 = vmatpush1.msra.mxu0 0.0
        %574 = vmatprep.subr.mxu0 0.0
        %575 = vmatpush1.msra.mxu0 0.0
        %576 = vmatprep.subr.mxu0 0.0
        %577 = vmatpush1.msra.mxu0 0.0
        %578 = vmatprep.subr.mxu0 0.0
        %579 = vmatpush1.msra.mxu0 0.0
        %580 = vmatprep.subr.mxu0 0.0
        %581 = vmatpush1.msra.mxu0 0.0
        %582 = vmatprep.subr.mxu0 0.0
        %583 = vmatpush1.msra.mxu0 0.0
        %584 = vmatprep.subr.mxu0 0.0
        %585 = vmatpush1.msra.mxu0 0.0
        %586 = vmatprep.subr.mxu0 0.0
        %587 = vmatpush1.msra.mxu0 0.0
        %588 = vmatprep.subr.mxu0 0.0
        %589 = vmatpush1.msra.mxu0 0.0
        %590 = vmatprep.subr.mxu0 0.0
        %591 = vmatpush1.msra.mxu0 0.0
        %592 = vmatprep.subr.mxu0 0.0
        %593 = vmatpush1.msra.mxu0 0.0
        %594 = vmatprep.subr.mxu0 0.0
        %595 = vmatpush1.msra.mxu0 0.0
        %596 = vmatprep.subr.mxu0 0.0
        %597 = vmatpush1.msra.mxu0 0.0
        %598 = vmatprep.subr.mxu0 0.0
        %599 = vmatpush1.msra.mxu0 0.0
        %600 = vmatprep.subr.mxu0 0.0
        %601 = vmatpush1.msra.mxu0 0.0
        %602 = vmatprep.subr.mxu0 0.0
        %603 = vmatpush1.msra.mxu0 0.0
        %604 = vmatprep.subr.mxu0 0.0
        %605 = vmatpush1.msra.mxu0 0.0
        %606 = vmatprep.subr.mxu0 0.0
        %607 = vmatpush1.msra.mxu0 0.0
        %608 = vmatprep.subr.mxu0 0.0
        %609 = vmatpush1.msra.mxu0 0.0
        %610 = vmatprep.subr.mxu0 0.0
        %611 = vmatpush1.msra.mxu0 0.0
        %612 = vmatprep.subr.mxu0 0.0
        %613 = vmatpush1.msra.mxu0 0.0
        %614 = vmatprep.subr.mxu0 0.0
        %615 = vmatpush1.msra.mxu0 0.0
        %616 = vmatprep.subr.mxu0 0.0
        %617 = vmatpush1.msra.mxu0 0.0
        %618 = vmatprep.subr.mxu0 0.0
        %619 = vmatpush1.msra.mxu0 0.0
        %620 = vmatprep.subr.mxu0 0.0
        %621 = vmatpush1.msra.mxu0 0.0
        %622 = vmatprep.subr.mxu0 0.0
        %623 = vmatpush1.msra.mxu0 0.0
        %624 = vmatprep.subr.mxu0 0.0
        %625 = vmatpush1.msra.mxu0 0.0
        %626 = vmatprep.subr.mxu0 0.0
        %627 = vmatpush1.msra.mxu0 0.0
        %628 = vmatprep.mubr.f32.mxu0 0.0
        %v629 = vand.u32 %v308, 4294901760
        %v630 = vsub.f32 %v308, %v629
        %v631 = vand.u32 %v630, 4294901760
        %632 = vmatmul.mubr.f32.gmra.mrb[0].mxu0 %v631
        %v633 = vpop.f32.mrb[0].mxu0
        %v634 = vadd.f32 %v557, %v633
        %v635 = vpop.f32.mrb[0].mxu0
        %636 = vdwg.mxu0
        %637 = vmatprep.subr.mxu0 0.0
        %v638 = vand.u32 %v271, 4294901760
        %v639 = vsub.f32 %v271, %v638
        %v640 = vand.u32 %v639, 4294901760
        %641 = vmatpush1.msra.mxu0 %v640
        %642 = vmatprep.subr.mxu0 0.0
        %v643 = vand.u32 %v272, 4294901760
        %v644 = vsub.f32 %v272, %v643
        %v645 = vand.u32 %v644, 4294901760
        %646 = vmatpush1.msra.mxu0 %v645
        %647 = vmatprep.subr.mxu0 0.0
        %v648 = vand.u32 %v273, 4294901760
        %v649 = vsub.f32 %v273, %v648
        %v650 = vand.u32 %v649, 4294901760
        %651 = vmatpush1.msra.mxu0 %v650
        %652 = vmatprep.subr.mxu0 0.0
        %v653 = vand.u32 %v274, 4294901760
        %v654 = vsub.f32 %v274, %v653
        %v655 = vand.u32 %v654, 4294901760
        %656 = vmatpush1.msra.mxu0 %v655
        %657 = vmatprep.subr.mxu0 0.0
        %658 = vmatpush1.msra.mxu0 0.0
        %659 = vmatprep.subr.mxu0 0.0
        %660 = vmatpush1.msra.mxu0 0.0
        %661 = vmatprep.subr.mxu0 0.0
        %662 = vmatpush1.msra.mxu0 0.0
        %663 = vmatprep.subr.mxu0 0.0
        %664 = vmatpush1.msra.mxu0 0.0
        %665 = vmatprep.subr.mxu0 0.0
        %666 = vmatpush1.msra.mxu0 0.0
        %667 = vmatprep.subr.mxu0 0.0
        %668 = vmatpush1.msra.mxu0 0.0
        %669 = vmatprep.subr.mxu0 0.0
        %670 = vmatpush1.msra.mxu0 0.0
        %671 = vmatprep.subr.mxu0 0.0
        %672 = vmatpush1.msra.mxu0 0.0
        %673 = vmatprep.subr.mxu0 0.0
        %674 = vmatpush1.msra.mxu0 0.0
        %675 = vmatprep.subr.mxu0 0.0
        %676 = vmatpush1.msra.mxu0 0.0
        %677 = vmatprep.subr.mxu0 0.0
        %678 = vmatpush1.msra.mxu0 0.0
        %679 = vmatprep.subr.mxu0 0.0
        %680 = vmatpush1.msra.mxu0 0.0
        %681 = vmatprep.subr.mxu0 0.0
        %682 = vmatpush1.msra.mxu0 0.0
        %683 = vmatprep.subr.mxu0 0.0
        %684 = vmatpush1.msra.mxu0 0.0
        %685 = vmatprep.subr.mxu0 0.0
        %686 = vmatpush1.msra.mxu0 0.0
        %687 = vmatprep.subr.mxu0 0.0
        %688 = vmatpush1.msra.mxu0 0.0
        %689 = vmatprep.subr.mxu0 0.0
        %690 = vmatpush1.msra.mxu0 0.0
        %691 = vmatprep.subr.mxu0 0.0
        %692 = vmatpush1.msra.mxu0 0.0
        %693 = vmatprep.subr.mxu0 0.0
        %694 = vmatpush1.msra.mxu0 0.0
        %695 = vmatprep.subr.mxu0 0.0
        %696 = vmatpush1.msra.mxu0 0.0
        %697 = vmatprep.subr.mxu0 0.0
        %698 = vmatpush1.msra.mxu0 0.0
        %699 = vmatprep.subr.mxu0 0.0
        %700 = vmatpush1.msra.mxu0 0.0
        %701 = vmatprep.subr.mxu0 0.0
        %702 = vmatpush1.msra.mxu0 0.0
        %703 = vmatprep.subr.mxu0 0.0
        %704 = vmatpush1.msra.mxu0 0.0
        %705 = vmatprep.subr.mxu0 0.0
        %706 = vmatpush1.msra.mxu0 0.0
        %707 = vmatprep.subr.mxu0 0.0
        %708 = vmatpush1.msra.mxu0 0.0
        %709 = vmatprep.subr.mxu0 0.0
        %710 = vmatpush1.msra.mxu0 0.0
        %711 = vmatprep.subr.mxu0 0.0
        %712 = vmatpush1.msra.mxu0 0.0
        %713 = vmatprep.mubr.f32.mxu0 0.0
        %v714 = vand.u32 %v308, 4294901760
        %715 = vmatmul.mubr.f32.gmra.mrb[0].mxu0 %v714
        %v716 = vpop.f32.mrb[0].mxu0
        %v717 = vadd.f32 %v634, %v716
        %v718 = vpop.f32.mrb[0].mxu0
        %719 = vdwg.mxu0
        %720 = vmatprep.subr.mxu0 0.0
        %v721 = vand.u32 %v271, 4294901760
        %722 = vmatpush1.msra.mxu0 %v721
        %723 = vmatprep.subr.mxu0 0.0
        %v724 = vand.u32 %v272, 4294901760
        %725 = vmatpush1.msra.mxu0 %v724
        %726 = vmatprep.subr.mxu0 0.0
        %v727 = vand.u32 %v273, 4294901760
        %728 = vmatpush1.msra.mxu0 %v727
        %729 = vmatprep.subr.mxu0 0.0
        %v730 = vand.u32 %v274, 4294901760
        %731 = vmatpush1.msra.mxu0 %v730
        %732 = vmatprep.subr.mxu0 0.0
        %733 = vmatpush1.msra.mxu0 0.0
        %734 = vmatprep.subr.mxu0 0.0
        %735 = vmatpush1.msra.mxu0 0.0
        %736 = vmatprep.subr.mxu0 0.0
        %737 = vmatpush1.msra.mxu0 0.0
        %738 = vmatprep.subr.mxu0 0.0
        %739 = vmatpush1.msra.mxu0 0.0
        %740 = vmatprep.subr.mxu0 0.0
        %741 = vmatpush1.msra.mxu0 0.0
        %742 = vmatprep.subr.mxu0 0.0
        %743 = vmatpush1.msra.mxu0 0.0
        %744 = vmatprep.subr.mxu0 0.0
        %745 = vmatpush1.msra.mxu0 0.0
        %746 = vmatprep.subr.mxu0 0.0
        %747 = vmatpush1.msra.mxu0 0.0
        %748 = vmatprep.subr.mxu0 0.0
        %749 = vmatpush1.msra.mxu0 0.0
        %750 = vmatprep.subr.mxu0 0.0
        %751 = vmatpush1.msra.mxu0 0.0
        %752 = vmatprep.subr.mxu0 0.0
        %753 = vmatpush1.msra.mxu0 0.0
        %754 = vmatprep.subr.mxu0 0.0
        %755 = vmatpush1.msra.mxu0 0.0
        %756 = vmatprep.subr.mxu0 0.0
        %757 = vmatpush1.msra.mxu0 0.0
        %758 = vmatprep.subr.mxu0 0.0
        %759 = vmatpush1.msra.mxu0 0.0
        %760 = vmatprep.subr.mxu0 0.0
        %761 = vmatpush1.msra.mxu0 0.0
        %762 = vmatprep.subr.mxu0 0.0
        %763 = vmatpush1.msra.mxu0 0.0
        %764 = vmatprep.subr.mxu0 0.0
        %765 = vmatpush1.msra.mxu0 0.0
        %766 = vmatprep.subr.mxu0 0.0
        %767 = vmatpush1.msra.mxu0 0.0
        %768 = vmatprep.subr.mxu0 0.0
        %769 = vmatpush1.msra.mxu0 0.0
        %770 = vmatprep.subr.mxu0 0.0
        %771 = vmatpush1.msra.mxu0 0.0
        %772 = vmatprep.subr.mxu0 0.0
        %773 = vmatpush1.msra.mxu0 0.0
        %774 = vmatprep.subr.mxu0 0.0
        %775 = vmatpush1.msra.mxu0 0.0
        %776 = vmatprep.subr.mxu0 0.0
        %777 = vmatpush1.msra.mxu0 0.0
        %778 = vmatprep.subr.mxu0 0.0
        %779 = vmatpush1.msra.mxu0 0.0
        %780 = vmatprep.subr.mxu0 0.0
        %781 = vmatpush1.msra.mxu0 0.0
        %782 = vmatprep.subr.mxu0 0.0
        %783 = vmatpush1.msra.mxu0 0.0
        %784 = vmatprep.subr.mxu0 0.0
        %785 = vmatpush1.msra.mxu0 0.0
        %786 = vmatprep.subr.mxu0 0.0
        %787 = vmatpush1.msra.mxu0 0.0
        %788 = vmatprep.mubr.f32.mxu0 0.0
        %v789 = vand.u32 %v308, 4294901760
        %790 = vmatmul.mubr.f32.gmra.mrb[0].mxu0 %v789
        %v791 = vpop.f32.mrb[0].mxu0
        %v792 = vadd.f32 %v717, %v791
        %v793 = vpop.f32.mrb[0].mxu0
        %794 = vdwg.mxu0
        %v795 = vmax.f32 %v792, 0.0
        %v796 = vld [vmem:[%s3] sm:$0x3]
        %v797 = vld [vmem:[%s4] sm:$0x1]
        %vm798 = vcmask 15360
        %v800 = vsel %vm798, %v795, 0
        %vm802 = vcmask 1041408
        %v804 = vsel %vm802, %v796, 0
        %806 = vmatprep.subr.mxu0 0.0
        %v807 = vand.u32 %v804, 4294901760
        %808 = vmatpush1.msra.mxu0 %v807
        %809 = vmatprep.subr.mxu0 0.0
        %810 = vmatpush1.msra.mxu0 0.0
        %811 = vmatprep.subr.mxu0 0.0
        %812 = vmatpush1.msra.mxu0 0.0
        %813 = vmatprep.subr.mxu0 0.0
        %814 = vmatpush1.msra.mxu0 0.0
        %815 = vmatprep.subr.mxu0 0.0
        %816 = vmatpush1.msra.mxu0 0.0
        %817 = vmatprep.subr.mxu0 0.0
        %818 = vmatpush1.msra.mxu0 0.0
        %819 = vmatprep.subr.mxu0 0.0
        %820 = vmatpush1.msra.mxu0 0.0
        %821 = vmatprep.subr.mxu0 0.0
        %822 = vmatpush1.msra.mxu0 0.0
        %823 = vmatprep.subr.mxu0 0.0
        %824 = vmatpush1.msra.mxu0 0.0
        %825 = vmatprep.subr.mxu0 0.0
        %826 = vmatpush1.msra.mxu0 0.0
        %827 = vmatprep.subr.mxu0 0.0
        %828 = vmatpush1.msra.mxu0 0.0
        %829 = vmatprep.subr.mxu0 0.0
        %830 = vmatpush1.msra.mxu0 0.0
        %831 = vmatprep.subr.mxu0 0.0
        %832 = vmatpush1.msra.mxu0 0.0
        %833 = vmatprep.subr.mxu0 0.0
        %834 = vmatpush1.msra.mxu0 0.0
        %835 = vmatprep.subr.mxu0 0.0
        %836 = vmatpush1.msra.mxu0 0.0
        %837 = vmatprep.subr.mxu0 0.0
        %838 = vmatpush1.msra.mxu0 0.0
        %839 = vmatprep.subr.mxu0 0.0
        %840 = vmatpush1.msra.mxu0 0.0
        %841 = vmatprep.subr.mxu0 0.0
        %842 = vmatpush1.msra.mxu0 0.0
        %843 = vmatprep.subr.mxu0 0.0
        %844 = vmatpush1.msra.mxu0 0.0
        %845 = vmatprep.subr.mxu0 0.0
        %846 = vmatpush1.msra.mxu0 0.0
        %847 = vmatprep.subr.mxu0 0.0
        %848 = vmatpush1.msra.mxu0 0.0
        %849 = vmatprep.subr.mxu0 0.0
        %850 = vmatpush1.msra.mxu0 0.0
        %851 = vmatprep.subr.mxu0 0.0
        %852 = vmatpush1.msra.mxu0 0.0
        %853 = vmatprep.subr.mxu0 0.0
        %854 = vmatpush1.msra.mxu0 0.0
        %855 = vmatprep.subr.mxu0 0.0
        %856 = vmatpush1.msra.mxu0 0.0
        %857 = vmatprep.subr.mxu0 0.0
        %858 = vmatpush1.msra.mxu0 0.0
        %859 = vmatprep.subr.mxu0 0.0
        %860 = vmatpush1.msra.mxu0 0.0
        %861 = vmatprep.subr.mxu0 0.0
        %862 = vmatpush1.msra.mxu0 0.0
        %863 = vmatprep.subr.mxu0 0.0
        %864 = vmatpush1.msra.mxu0 0.0
        %865 = vmatprep.subr.mxu0 0.0
        %866 = vmatpush1.msra.mxu0 0.0
        %867 = vmatprep.subr.mxu0 0.0
        %868 = vmatpush1.msra.mxu0 0.0
        %869 = vmatprep.subr.mxu0 0.0
        %870 = vmatpush1.msra.mxu0 0.0
        %871 = vmatprep.mubr.f32.mxu0 0.0
        %v872 = vand.u32 %v800, 4294901760
        %v873 = vsub.f32 %v800, %v872
        %v874 = vand.u32 %v873, 4294901760
        %v875 = vsub.f32 %v873, %v874
        %v876 = vand.u32 %v875, 4294901760
        %877 = vmatmul.mubr.f32.gmra.mrb[0].mxu0 %v876
        %v878 = vpop.f32.mrb[0].mxu0
        %v879 = vadd.f32 %v797, %v878
        %v880 = vpop.f32.mrb[0].mxu0
        %881 = vdwg.mxu0
        %882 = vmatprep.subr.mxu0 0.0
        %v883 = vand.u32 %v804, 4294901760
        %v884 = vsub.f32 %v804, %v883
        %v885 = vand.u32 %v884, 4294901760
        %v886 = vsub.f32 %v884, %v885
        %v887 = vand.u32 %v886, 4294901760
        %888 = vmatpush1.msra.mxu0 %v887
        %889 = vmatprep.subr.mxu0 0.0
        %890 = vmatpush1.msra.mxu0 0.0
        %891 = vmatprep.subr.mxu0 0.0
        %892 = vmatpush1.msra.mxu0 0.0
        %893 = vmatprep.subr.mxu0 0.0
        %894 = vmatpush1.msra.mxu0 0.0
        %895 = vmatprep.subr.mxu0 0.0
        %896 = vmatpush1.msra.mxu0 0.0
        %897 = vmatprep.subr.mxu0 0.0
        %898 = vmatpush1.msra.mxu0 0.0
        %899 = vmatprep.subr.mxu0 0.0
        %900 = vmatpush1.msra.mxu0 0.0
        %901 = vmatprep.subr.mxu0 0.0
        %902 = vmatpush1.msra.mxu0 0.0
        %903 = vmatprep.subr.mxu0 0.0
        %904 = vmatpush1.msra.mxu0 0.0
        %905 = vmatprep.subr.mxu0 0.0
        %906 = vmatpush1.msra.mxu0 0.0
        %907 = vmatprep.subr.mxu0 0.0
        %908 = vmatpush1.msra.mxu0 0.0
        %909 = vmatprep.subr.mxu0 0.0
        %910 = vmatpush1.msra.mxu0 0.0
        %911 = vmatprep.subr.mxu0 0.0
        %912 = vmatpush1.msra.mxu0 0.0
        %913 = vmatprep.subr.mxu0 0.0
        %914 = vmatpush1.msra.mxu0 0.0
        %915 = vmatprep.subr.mxu0 0.0
        %916 = vmatpush1.msra.mxu0 0.0
        %917 = vmatprep.subr.mxu0 0.0
        %918 = vmatpush1.msra.mxu0 0.0
        %919 = vmatprep.subr.mxu0 0.0
        %920 = vmatpush1.msra.mxu0 0.0
        %921 = vmatprep.subr.mxu0 0.0
        %922 = vmatpush1.msra.mxu0 0.0
        %923 = vmatprep.subr.mxu0 0.0
        %924 = vmatpush1.msra.mxu0 0.0
        %925 = vmatprep.subr.mxu0 0.0
        %926 = vmatpush1.msra.mxu0 0.0
        %927 = vmatprep.subr.mxu0 0.0
        %928 = vmatpush1.msra.mxu0 0.0
        %929 = vmatprep.subr.mxu0 0.0
        %930 = vmatpush1.msra.mxu0 0.0
        %931 = vmatprep.subr.mxu0 0.0
        %932 = vmatpush1.msra.mxu0 0.0
        %933 = vmatprep.subr.mxu0 0.0
        %934 = vmatpush1.msra.mxu0 0.0
        %935 = vmatprep.subr.mxu0 0.0
        %936 = vmatpush1.msra.mxu0 0.0
        %937 = vmatprep.subr.mxu0 0.0
        %938 = vmatpush1.msra.mxu0 0.0
        %939 = vmatprep.subr.mxu0 0.0
        %940 = vmatpush1.msra.mxu0 0.0
        %941 = vmatprep.subr.mxu0 0.0
        %942 = vmatpush1.msra.mxu0 0.0
        %943 = vmatprep.subr.mxu0 0.0
        %944 = vmatpush1.msra.mxu0 0.0
        %945 = vmatprep.subr.mxu0 0.0
        %946 = vmatpush1.msra.mxu0 0.0
        %947 = vmatprep.subr.mxu0 0.0
        %948 = vmatpush1.msra.mxu0 0.0
        %949 = vmatprep.subr.mxu0 0.0
        %950 = vmatpush1.msra.mxu0 0.0
        %951 = vmatprep.mubr.f32.mxu0 0.0
        %v952 = vand.u32 %v800, 4294901760
        %953 = vmatmul.mubr.f32.gmra.mrb[0].mxu0 %v952
        %v954 = vpop.f32.mrb[0].mxu0
        %v955 = vadd.f32 %v879, %v954
        %v956 = vpop.f32.mrb[0].mxu0
        %957 = vdwg.mxu0
        %958 = vmatprep.subr.mxu0 0.0
        %v959 = vand.u32 %v804, 4294901760
        %v960 = vsub.f32 %v804, %v959
        %961 = vmatpush1.msra.mxu0 %v960
        %962 = vmatprep.subr.mxu0 0.0
        %963 = vmatpush1.msra.mxu0 0.0
        %964 = vmatprep.subr.mxu0 0.0
        %965 = vmatpush1.msra.mxu0 0.0
        %966 = vmatprep.subr.mxu0 0.0
        %967 = vmatpush1.msra.mxu0 0.0
        %968 = vmatprep.subr.mxu0 0.0
        %969 = vmatpush1.msra.mxu0 0.0
        %970 = vmatprep.subr.mxu0 0.0
        %971 = vmatpush1.msra.mxu0 0.0
        %972 = vmatprep.subr.mxu0 0.0
        %973 = vmatpush1.msra.mxu0 0.0
        %974 = vmatprep.subr.mxu0 0.0
        %975 = vmatpush1.msra.mxu0 0.0
        %976 = vmatprep.subr.mxu0 0.0
        %977 = vmatpush1.msra.mxu0 0.0
        %978 = vmatprep.subr.mxu0 0.0
        %979 = vmatpush1.msra.mxu0 0.0
        %980 = vmatprep.subr.mxu0 0.0
        %981 = vmatpush1.msra.mxu0 0.0
        %982 = vmatprep.subr.mxu0 0.0
        %983 = vmatpush1.msra.mxu0 0.0
        %984 = vmatprep.subr.mxu0 0.0
        %985 = vmatpush1.msra.mxu0 0.0
        %986 = vmatprep.subr.mxu0 0.0
        %987 = vmatpush1.msra.mxu0 0.0
        %988 = vmatprep.subr.mxu0 0.0
        %989 = vmatpush1.msra.mxu0 0.0
        %990 = vmatprep.subr.mxu0 0.0
        %991 = vmatpush1.msra.mxu0 0.0
        %992 = vmatprep.subr.mxu0 0.0
        %993 = vmatpush1.msra.mxu0 0.0
        %994 = vmatprep.subr.mxu0 0.0
        %995 = vmatpush1.msra.mxu0 0.0
        %996 = vmatprep.subr.mxu0 0.0
        %997 = vmatpush1.msra.mxu0 0.0
        %998 = vmatprep.subr.mxu0 0.0
        %999 = vmatpush1.msra.mxu0 0.0
        %1000 = vmatprep.subr.mxu0 0.0
        %1001 = vmatpush1.msra.mxu0 0.0
        %1002 = vmatprep.subr.mxu0 0.0
        %1003 = vmatpush1.msra.mxu0 0.0
        %1004 = vmatprep.subr.mxu0 0.0
        %1005 = vmatpush1.msra.mxu0 0.0
        %1006 = vmatprep.subr.mxu0 0.0
        %1007 = vmatpush1.msra.mxu0 0.0
        %1008 = vmatprep.subr.mxu0 0.0
        %1009 = vmatpush1.msra.mxu0 0.0
        %1010 = vmatprep.subr.mxu0 0.0
        %1011 = vmatpush1.msra.mxu0 0.0
        %1012 = vmatprep.subr.mxu0 0.0
        %1013 = vmatpush1.msra.mxu0 0.0
        %1014 = vmatprep.subr.mxu0 0.0
        %1015 = vmatpush1.msra.mxu0 0.0
        %1016 = vmatprep.subr.mxu0 0.0
        %1017 = vmatpush1.msra.mxu0 0.0
        %1018 = vmatprep.subr.mxu0 0.0
        %1019 = vmatpush1.msra.mxu0 0.0
        %1020 = vmatprep.subr.mxu0 0.0
        %1021 = vmatpush1.msra.mxu0 0.0
        %1022 = vmatprep.subr.mxu0 0.0
        %1023 = vmatpush1.msra.mxu0 0.0
        %1024 = vmatprep.mubr.f32.mxu0 0.0
        %v1025 = vand.u32 %v800, 4294901760
        %v1026 = vsub.f32 %v800, %v1025
        %1027 = vmatmul.mubr.f32.gmra.mrb[0].mxu0 %v1026
        %v1028 = vpop.f32.mrb[0].mxu0
        %v1029 = vadd.f32 %v955, %v1028
        %v1030 = vpop.f32.mrb[0].mxu0
        %1031 = vdwg.mxu0
        %1032 = vmatprep.subr.mxu0 0.0
        %v1033 = vand.u32 %v804, 4294901760
        %1034 = vmatpush1.msra.mxu0 %v1033
        %1035 = vmatprep.subr.mxu0 0.0
        %1036 = vmatpush1.msra.mxu0 0.0
        %1037 = vmatprep.subr.mxu0 0.0
        %1038 = vmatpush1.msra.mxu0 0.0
        %1039 = vmatprep.subr.mxu0 0.0
        %1040 = vmatpush1.msra.mxu0 0.0
        %1041 = vmatprep.subr.mxu0 0.0
        %1042 = vmatpush1.msra.mxu0 0.0
        %1043 = vmatprep.subr.mxu0 0.0
        %1044 = vmatpush1.msra.mxu0 0.0
        %1045 = vmatprep.subr.mxu0 0.0
        %1046 = vmatpush1.msra.mxu0 0.0
        %1047 = vmatprep.subr.mxu0 0.0
        %1048 = vmatpush1.msra.mxu0 0.0
        %1049 = vmatprep.subr.mxu0 0.0
        %1050 = vmatpush1.msra.mxu0 0.0
        %1051 = vmatprep.subr.mxu0 0.0
        %1052 = vmatpush1.msra.mxu0 0.0
        %1053 = vmatprep.subr.mxu0 0.0
        %1054 = vmatpush1.msra.mxu0 0.0
        %1055 = vmatprep.subr.mxu0 0.0
        %1056 = vmatpush1.msra.mxu0 0.0
        %1057 = vmatprep.subr.mxu0 0.0
        %1058 = vmatpush1.msra.mxu0 0.0
        %1059 = vmatprep.subr.mxu0 0.0
        %1060 = vmatpush1.msra.mxu0 0.0
        %1061 = vmatprep.subr.mxu0 0.0
        %1062 = vmatpush1.msra.mxu0 0.0
        %1063 = vmatprep.subr.mxu0 0.0
        %1064 = vmatpush1.msra.mxu0 0.0
        %1065 = vmatprep.subr.mxu0 0.0
        %1066 = vmatpush1.msra.mxu0 0.0
        %1067 = vmatprep.subr.mxu0 0.0
        %1068 = vmatpush1.msra.mxu0 0.0
        %1069 = vmatprep.subr.mxu0 0.0
        %1070 = vmatpush1.msra.mxu0 0.0
        %1071 = vmatprep.subr.mxu0 0.0
        %1072 = vmatpush1.msra.mxu0 0.0
        %1073 = vmatprep.subr.mxu0 0.0
        %1074 = vmatpush1.msra.mxu0 0.0
        %1075 = vmatprep.subr.mxu0 0.0
        %1076 = vmatpush1.msra.mxu0 0.0
        %1077 = vmatprep.subr.mxu0 0.0
        %1078 = vmatpush1.msra.mxu0 0.0
        %1079 = vmatprep.subr.mxu0 0.0
        %1080 = vmatpush1.msra.mxu0 0.0
        %1081 = vmatprep.subr.mxu0 0.0
        %1082 = vmatpush1.msra.mxu0 0.0
        %1083 = vmatprep.subr.mxu0 0.0
        %1084 = vmatpush1.msra.mxu0 0.0
        %1085 = vmatprep.subr.mxu0 0.0
        %1086 = vmatpush1.msra.mxu0 0.0
        %1087 = vmatprep.subr.mxu0 0.0
        %1088 = vmatpush1.msra.mxu0 0.0
        %1089 = vmatprep.subr.mxu0 0.0
        %1090 = vmatpush1.msra.mxu0 0.0
        %1091 = vmatprep.subr.mxu0 0.0
        %1092 = vmatpush1.msra.mxu0 0.0
        %1093 = vmatprep.subr.mxu0 0.0
        %1094 = vmatpush1.msra.mxu0 0.0
        %1095 = vmatprep.subr.mxu0 0.0
        %1096 = vmatpush1.msra.mxu0 0.0
        %1097 = vmatprep.mubr.f32.mxu0 0.0
        %v1098 = vand.u32 %v800, 4294901760
        %v1099 = vsub.f32 %v800, %v1098
        %v1100 = vand.u32 %v1099, 4294901760
        %1101 = vmatmul.mubr.f32.gmra.mrb[0].mxu0 %v1100
        %v1102 = vpop.f32.mrb[0].mxu0
        %v1103 = vadd.f32 %v1029, %v1102
        %v1104 = vpop.f32.mrb[0].mxu0
        %1105 = vdwg.mxu0
        %1106 = vmatprep.subr.mxu0 0.0
        %v1107 = vand.u32 %v804, 4294901760
        %v1108 = vsub.f32 %v804, %v1107
        %v1109 = vand.u32 %v1108, 4294901760
        %1110 = vmatpush1.msra.mxu0 %v1109
        %1111 = vmatprep.subr.mxu0 0.0
        %1112 = vmatpush1.msra.mxu0 0.0
        %1113 = vmatprep.subr.mxu0 0.0
        %1114 = vmatpush1.msra.mxu0 0.0
        %1115 = vmatprep.subr.mxu0 0.0
        %1116 = vmatpush1.msra.mxu0 0.0
        %1117 = vmatprep.subr.mxu0 0.0
        %1118 = vmatpush1.msra.mxu0 0.0
        %1119 = vmatprep.subr.mxu0 0.0
        %1120 = vmatpush1.msra.mxu0 0.0
        %1121 = vmatprep.subr.mxu0 0.0
        %1122 = vmatpush1.msra.mxu0 0.0
        %1123 = vmatprep.subr.mxu0 0.0
        %1124 = vmatpush1.msra.mxu0 0.0
        %1125 = vmatprep.subr.mxu0 0.0
        %1126 = vmatpush1.msra.mxu0 0.0
        %1127 = vmatprep.subr.mxu0 0.0
        %1128 = vmatpush1.msra.mxu0 0.0
        %1129 = vmatprep.subr.mxu0 0.0
        %1130 = vmatpush1.msra.mxu0 0.0
        %1131 = vmatprep.subr.mxu0 0.0
        %1132 = vmatpush1.msra.mxu0 0.0
        %1133 = vmatprep.subr.mxu0 0.0
        %1134 = vmatpush1.msra.mxu0 0.0
        %1135 = vmatprep.subr.mxu0 0.0
        %1136 = vmatpush1.msra.mxu0 0.0
        %1137 = vmatprep.subr.mxu0 0.0
        %1138 = vmatpush1.msra.mxu0 0.0
        %1139 = vmatprep.subr.mxu0 0.0
        %1140 = vmatpush1.msra.mxu0 0.0
        %1141 = vmatprep.subr.mxu0 0.0
        %1142 = vmatpush1.msra.mxu0 0.0
        %1143 = vmatprep.subr.mxu0 0.0
        %1144 = vmatpush1.msra.mxu0 0.0
        %1145 = vmatprep.subr.mxu0 0.0
        %1146 = vmatpush1.msra.mxu0 0.0
        %1147 = vmatprep.subr.mxu0 0.0
        %1148 = vmatpush1.msra.mxu0 0.0
        %1149 = vmatprep.subr.mxu0 0.0
        %1150 = vmatpush1.msra.mxu0 0.0
        %1151 = vmatprep.subr.mxu0 0.0
        %1152 = vmatpush1.msra.mxu0 0.0
        %1153 = vmatprep.subr.mxu0 0.0
        %1154 = vmatpush1.msra.mxu0 0.0
        %1155 = vmatprep.subr.mxu0 0.0
        %1156 = vmatpush1.msra.mxu0 0.0
        %1157 = vmatprep.subr.mxu0 0.0
        %1158 = vmatpush1.msra.mxu0 0.0
        %1159 = vmatprep.subr.mxu0 0.0
        %1160 = vmatpush1.msra.mxu0 0.0
        %1161 = vmatprep.subr.mxu0 0.0
        %1162 = vmatpush1.msra.mxu0 0.0
        %1163 = vmatprep.subr.mxu0 0.0
        %1164 = vmatpush1.msra.mxu0 0.0
        %1165 = vmatprep.subr.mxu0 0.0
        %1166 = vmatpush1.msra.mxu0 0.0
        %1167 = vmatprep.subr.mxu0 0.0
        %1168 = vmatpush1.msra.mxu0 0.0
        %1169 = vmatprep.subr.mxu0 0.0
        %1170 = vmatpush1.msra.mxu0 0.0
        %1171 = vmatprep.subr.mxu0 0.0
        %1172 = vmatpush1.msra.mxu0 0.0
        %1173 = vmatprep.mubr.f32.mxu0 0.0
        %v1174 = vand.u32 %v800, 4294901760
        %1175 = vmatmul.mubr.f32.gmra.mrb[0].mxu0 %v1174
        %v1176 = vpop.f32.mrb[0].mxu0
        %v1177 = vadd.f32 %v1103, %v1176
        %v1178 = vpop.f32.mrb[0].mxu0
        %1179 = vdwg.mxu0
        %1180 = vmatprep.subr.mxu0 0.0
        %v1181 = vand.u32 %v804, 4294901760
        %1182 = vmatpush1.msra.mxu0 %v1181
        %1183 = vmatprep.subr.mxu0 0.0
        %1184 = vmatpush1.msra.mxu0 0.0
        %1185 = vmatprep.subr.mxu0 0.0
        %1186 = vmatpush1.msra.mxu0 0.0
        %1187 = vmatprep.subr.mxu0 0.0
        %1188 = vmatpush1.msra.mxu0 0.0
        %1189 = vmatprep.subr.mxu0 0.0
        %1190 = vmatpush1.msra.mxu0 0.0
        %1191 = vmatprep.subr.mxu0 0.0
        %1192 = vmatpush1.msra.mxu0 0.0
        %1193 = vmatprep.subr.mxu0 0.0
        %1194 = vmatpush1.msra.mxu0 0.0
        %1195 = vmatprep.subr.mxu0 0.0
        %1196 = vmatpush1.msra.mxu0 0.0
        %1197 = vmatprep.subr.mxu0 0.0
        %1198 = vmatpush1.msra.mxu0 0.0
        %1199 = vmatprep.subr.mxu0 0.0
        %1200 = vmatpush1.msra.mxu0 0.0
        %1201 = vmatprep.subr.mxu0 0.0
        %1202 = vmatpush1.msra.mxu0 0.0
        %1203 = vmatprep.subr.mxu0 0.0
        %1204 = vmatpush1.msra.mxu0 0.0
        %1205 = vmatprep.subr.mxu0 0.0
        %1206 = vmatpush1.msra.mxu0 0.0
        %1207 = vmatprep.subr.mxu0 0.0
        %1208 = vmatpush1.msra.mxu0 0.0
        %1209 = vmatprep.subr.mxu0 0.0
        %1210 = vmatpush1.msra.mxu0 0.0
        %1211 = vmatprep.subr.mxu0 0.0
        %1212 = vmatpush1.msra.mxu0 0.0
        %1213 = vmatprep.subr.mxu0 0.0
        %1214 = vmatpush1.msra.mxu0 0.0
        %1215 = vmatprep.subr.mxu0 0.0
        %1216 = vmatpush1.msra.mxu0 0.0
        %1217 = vmatprep.subr.mxu0 0.0
        %1218 = vmatpush1.msra.mxu0 0.0
        %1219 = vmatprep.subr.mxu0 0.0
        %1220 = vmatpush1.msra.mxu0 0.0
        %1221 = vmatprep.subr.mxu0 0.0
        %1222 = vmatpush1.msra.mxu0 0.0
        %1223 = vmatprep.subr.mxu0 0.0
        %1224 = vmatpush1.msra.mxu0 0.0
        %1225 = vmatprep.subr.mxu0 0.0
        %1226 = vmatpush1.msra.mxu0 0.0
        %1227 = vmatprep.subr.mxu0 0.0
        %1228 = vmatpush1.msra.mxu0 0.0
        %1229 = vmatprep.subr.mxu0 0.0
        %1230 = vmatpush1.msra.mxu0 0.0
        %1231 = vmatprep.subr.mxu0 0.0
        %1232 = vmatpush1.msra.mxu0 0.0
        %1233 = vmatprep.subr.mxu0 0.0
        %1234 = vmatpush1.msra.mxu0 0.0
        %1235 = vmatprep.subr.mxu0 0.0
        %1236 = vmatpush1.msra.mxu0 0.0
        %1237 = vmatprep.subr.mxu0 0.0
        %1238 = vmatpush1.msra.mxu0 0.0
        %1239 = vmatprep.subr.mxu0 0.0
        %1240 = vmatpush1.msra.mxu0 0.0
        %1241 = vmatprep.subr.mxu0 0.0
        %1242 = vmatpush1.msra.mxu0 0.0
        %1243 = vmatprep.subr.mxu0 0.0
        %1244 = vmatpush1.msra.mxu0 0.0
        %1245 = vmatprep.mubr.f32.mxu0 0.0
        %v1246 = vand.u32 %v800, 4294901760
        %1247 = vmatmul.mubr.f32.gmra.mrb[0].mxu0 %v1246
        %v1248 = vpop.f32.mrb[0].mxu0
        %v1249 = vadd.f32 %v1177, %v1248
        %v1250 = vpop.f32.mrb[0].mxu0
        %1251 = vdwg.mxu0
        %v1252 = vxor.u32 %v1249, 2147483648
        %v1253 = vmul.f32 %v1252, 1.442695
        %v1254 = vpow.pop %v1253
        %v1255 = vadd.f32 %v1254, 1.0
        %v1256 = vrcp.pop %v1255
        %v1257 = vmul.f32 1.0, %v1256
        %v1258 = vlaneseq
        %v1259 = vshrl.u32 %v1258, 7
        %v1260 = vsub.s32 0, %v1259
        %v1261 = vrot.slane %v1257, %v1260
        %1263 = vbcast.lane.b32.xlu0 %v1261, 256
        %v1264 = vpop.permute.xlu0 %1263
        %s1266 = sor.u32 256, 8
        %1267 = vbcast.lane.b32.xlu0 %v1261, %s1266
        %v1268 = vpop.permute.xlu0 %1267
        %s1270 = sor.u32 256, 16
        %1271 = vbcast.lane.b32.xlu0 %v1261, %s1270
        %v1272 = vpop.permute.xlu0 %1271
        %s1274 = sor.u32 256, 24
        %1275 = vbcast.lane.b32.xlu0 %v1261, %s1274
        %v1276 = vpop.permute.xlu0 %1275
        %v1277 = vmul.f32 %v243, %v1264
        %v1278 = vmul.f32 %v244, %v1264
        %v1279 = vmul.f32 %v245, %v1268
        %v1280 = vmul.f32 %v246, %v1268
        %v1281 = vmul.f32 %v247, %v1272
        %v1282 = vmul.f32 %v248, %v1272
        %v1283 = vmul.f32 %v249, %v1276
        %v1284 = vmul.f32 %v250, %v1276
        %1285 = vst [vmem:[%s242] sm:$0xff] %v1277
        %1286 = vst [vmem:[%s242 + $0x8] sm:$0xff] %v1278
        %1287 = vst [vmem:[%s242 + $0x10] sm:$0xff] %v1279
        %1288 = vst [vmem:[%s242 + $0x18] sm:$0xff] %v1280
        %1289 = vst [vmem:[%s242 + $0x20] sm:$0xff] %v1281
        %1290 = vst [vmem:[%s242 + $0x28] sm:$0xff] %v1282
        %1291 = vst [vmem:[%s242 + $0x30] sm:$0xff] %v1283
        %1292 = vst [vmem:[%s242 + $0x38] sm:$0xff] %v1284
        %s1293 = sand.u32 %s140, 1
        %s1294 = scalar_lea.sflag [#allocation4], %s1293
        %s1295 = sand.u32 %s140, 1
        %s1296 = smul.addr %s1295, 64
        %s1297 = scalar_lea.vmem [#allocation5], %s1296
        // Predicated region
        $region45: #{tpu_custom_call.1} parent=39 // pred_check
          %p1298 = pneg %p150
        $region46: #{tpu_custom_call.1} parent=39 // pred_check_branch
          %1300 = sbr.rel (%p1298) target = $region48
        $region47: #{tpu_custom_call.1} parent=39 // pred_region
          %s1302 = ssub.s32 1024, 1024
          %1303 = vsyncadd %s1294, %s1302
          %s1304 = smul.addr %s22, 8
          %s1305 = smul.addr %s1304, 128
          %s1306 = scalar_lea.hbm %s5, %s1305
          %s1307 = sshll.u32 %s1297, 4
          %s1308 = int_to_ptr.vmem [resolvable:$true] %s1307
          %1313 = dma.vmem_to_hbm [thread:$0]  %s1308, 1024, %s1306, %s1294, 256, 256, 16
        $region48: #{tpu_custom_call.1} parent=39 // pred_fallthru
          _
      $region40: #{tpu_custom_call.1} parent=5 // pred_fallthru
        _
      %p1314 = scmp.le.s32.totalorder 2, %s17
      // Predicated region
      $region49: #{tpu_custom_call.1} parent=5 // pred_check
        %p1315 = pneg %p1314
      $region50: #{tpu_custom_call.1} parent=5 // pred_check_branch
        %1317 = sbr.rel (%p1315) target = $region52
      $region51: #{tpu_custom_call.1} parent=5 // pred_region
        %s1318 = ssub.s32 %s17, 2
        // Predicated region
        $region53: #{tpu_custom_call.1} parent=51 // pred_check
          %p1319 = pneg %p156
        $region54: #{tpu_custom_call.1} parent=51 // pred_check_branch
          %1321 = sbr.rel (%p1319) target = $region56
        $region55: #{tpu_custom_call.1} parent=51 // pred_region
          %s1322 = sand.u32 %s141, 1
          %s1323 = scalar_lea.sflag [#allocation4], %s1322
          %s1324 = sand.u32 %s141, 1
          %s1325 = smul.addr %s1324, 64
          %s1326 = scalar_lea.vmem [#allocation5], %s1325
          %1327 = dma.done %s1323, 1024
        $region56: #{tpu_custom_call.1} parent=51 // pred_fallthru
          _
      $region52: #{tpu_custom_call.1} parent=5 // pred_fallthru
        _
    $region6: #{tpu_custom_call.1} parent=1 // loop_footer
      %s21 = sadd.s32 1, %s17
    $region7: #{tpu_custom_call.1} parent=1 // loop_footer_branch
      %16 = sbr.rel target = $region3
    $region8: #{tpu_custom_call.1} parent=1 // loop_exit
      _
    %1328 = vsyncpa [#allocation3], 1
    %s1329 = scalar_lea.sflag [#allocation3], 1
    %1330 = vsyncpa %s1329, 1
    %1331 = vsyncpa [#allocation4], 1
    %s1332 = scalar_lea.sflag [#allocation4], 1
    %1333 = vsyncpa %s1332, 1

</llo_original>
